<compile_context>
chip_gen: v7x
topology: tpu7x:2x2x1
jax: 0.10.0
libtpu: 0.0.40
codegen_flags: <defaults>
</compile_context>

<pallas_src>
import functools
from itertools import combinations

import jax
import jax.numpy as jnp
from jax.experimental import pallas as pl
from jax.experimental.pallas import tpu as pltpu


_MAX_FUSED_LANES = 4096  # max lane width of one fused score matmul


# ----------------------------------------------------------------------------
# In-kernel helpers
# ----------------------------------------------------------------------------
def _attention_aggregate(make_row, n_rows, w1t, b1, w2, tile_b, fuse_rows):
    """AttentionalAggregation over `n_rows` rows in batch-on-lanes layout.

    make_row(n): returns row n as a (D, TILE_B) tile.  Rows are recomputed on
                 demand (cheap vmuls) instead of being held live across the
                 softmax, keeping the working set to O(1) tiles.
    w1t: (H, D)  first Linear weight (transposed)
    b1 : (H, 1)  first Linear bias (column)
    w2 : (H, 1)  second Linear weight (column, no bias)
    returns (D, TILE_B): attention-weighted sum over the rows.
    """
    # --- score pass: fused (H, D) @ (D, cnt*TILE_B) matmuls -----------------
    scores = []
    for start in range(0, n_rows, fuse_rows):
        cnt = min(fuse_rows, n_rows - start)
        if cnt == 1:
            blk = make_row(start)                                    # (D, TB)
        else:  # only taken when TILE_B % 128 == 0 (lane-aligned concat)
            blk = jnp.concatenate(
                [make_row(start + j) for j in range(cnt)], axis=1)   # (D, cnt*TB)
        h = jnp.dot(w1t, blk, preferred_element_type=jnp.float32)    # MXU
        h = jnp.maximum(h + b1, 0.0)                                 # (H, cnt*TB)
        sc = jnp.sum(h * w2, axis=0, keepdims=True)                  # (1, cnt*TB)
        for j in range(cnt):
            scores.append(sc[:, j * tile_b:(j + 1) * tile_b])        # (1, TB)

    # --- softmax over the row axis: elementwise per lane --------------------
    m = scores[0]
    for sc in scores[1:]:
        m = jnp.maximum(m, sc)
    exps = [jnp.exp(sc - m) for sc in scores]                        # EUP
    denom = exps[0]
    for e in exps[1:]:
        denom = denom + e
    inv = pl.reciprocal(denom, approx=False)  # exact: weights sum to 1

    # --- weighted sum: recompute rows instead of holding them live ----------
    out = (exps[0] * inv) * make_row(0)
    for n in range(1, n_rows):
        out = out + (exps[n] * inv) * make_row(n)
    return out                                                       # (D, TB)


def _fused_kernel(
    x_ref,      # (F, D, TILE_B)  feature_emb, field-major, batch on lanes
    cw1_ref,    # (order, H, D)   cross first-Linear weights (transposed)
    cb1_ref,    # (order, H, 1)   cross first-Linear biases
    cw2_ref,    # (order, H, 1)   cross second-Linear weights
    aw1_ref,    # (H, D)
    ab1_ref,    # (H, 1)
    aw2_ref,    # (H, 1)
    fcw_ref,    # (D, 1)
    fcb_ref,    # (1, 1)  SMEM scalar
    out_ref,    # (1, TILE_B)     lane-dense output block
    *,
    order,
    field_p,
    field_q,
    fuse_rows,
):
    F = x_ref.shape[0]
    TB = x_ref.shape[2]

    # X_i algebra: cross_result broadcasts over fields, so
    #   X_i = (1 + sum_{j<i} cr_j) * X_0.
    # Only the running (D, TILE_B) factor `s` is kept; X_0 fields are re-read
    # from the VMEM input block on demand and rows recomputed with 1-2 vmuls.
    s = None                  # factor == 1 at i == 0
    pooled = []
    for i in range(order):    # `order` is static -> unrolled
        w1t = cw1_ref[i]      # (H, D)
        b1 = cb1_ref[i]       # (H, 1)
        w2 = cw2_ref[i]       # (H, 1)

        if i == 0:
            # Pairwise cross products of X_0 (static field_p / field_q).
            def make_row(n):
                return x_ref[field_p[n]] * x_ref[field_q[n]]
            n_rows = len(field_p)
        else:
            # X_0[f] * X_i[f] = X_0[f]^2 * s
            def make_row(n, s=s):
                xf = x_ref[n]
                return (xf * xf) * s
            n_rows = F

        cr = _attention_aggregate(make_row, n_rows, w1t, b1, w2, TB, fuse_rows)
        pooled.append(cr)
        if i + 1 < order:
            s = (1.0 + cr) if s is None else (s + cr)

    # Final attention over the `order` pooled outputs.
    u = _attention_aggregate(
        lambda n: pooled[n], order,
        aw1_ref[...], ab1_ref[...], aw2_ref[...], TB, fuse_rows)     # (D, TB)

    # fc epilogue: sublane reduction over D -> lane-dense (1, TILE_B) store.
    out_ref[...] = (
        jnp.sum(u * fcw_ref[...], axis=0, keepdims=True) + fcb_ref[0, 0]
    )


# ----------------------------------------------------------------------------
# Wrapper: one fused pallas_call for the whole forward
# ----------------------------------------------------------------------------
def _pick_tile_b(batch, tile_b):
    if batch < 256:
        return batch  # single full-width tile (block == full dim is legal)
    # Lane-aligned tile; aim for >= 2 grid steps so both v7x TensorCores get
    # work under dimension_semantics=("parallel",).
    half = (batch + 1) // 2
    aligned = max(128, (half // 128) * 128)
    return min(tile_b, aligned)


def cross_net_attention_forward(
    feature_emb, params, field_p, field_q, order, tile_b=2048
):
    """feature_emb: (B, F, D) float32 -> (B, 1) float32."""
    B, F, D = feature_emb.shape
    H = params["attn"][0].shape[1]
    field_p = tuple(int(p) for p in field_p)
    field_q = tuple(int(q) for q in field_q)

    # Batch-on-lanes layout (F, D, B): one HBM relayout pass, no padding.
    # TODO(synk): have the embedding producer emit (F, D, B) directly so this
    # transpose disappears from the per-step HBM traffic.
    x_t = jnp.transpose(feature_emb.astype(jnp.float32), (1, 2, 0))  # (F, D, B)

    TILE_B = _pick_tile_b(B, tile_b)
    grid = (pl.cdiv(B, TILE_B),)
    # Fuse several rows into one score matmul only when chunks stay
    # lane-aligned (TILE_B a multiple of 128).
    fuse_rows = max(1, _MAX_FUSED_LANES // TILE_B) if TILE_B % 128 == 0 else 1

    # Stack the per-order cross weights so they are static-indexable in-kernel;
    # first Linear transposed to (H, D), bias / second Linear as columns.
    cw1t = jnp.stack([w1.T for (w1, _, _) in params["cross"]], axis=0)        # (o,H,D)
    cb1 = jnp.stack([b1.reshape(H, 1) for (_, b1, _) in params["cross"]], 0)  # (o,H,1)
    cw2 = jnp.stack([w2.reshape(H, 1) for (_, _, w2) in params["cross"]], 0)  # (o,H,1)
    aw1, ab1, aw2 = params["attn"]
    aw1t = aw1.T                     # (H, D)
    ab1c = ab1.reshape(H, 1)         # (H, 1)
    aw2c = aw2.reshape(H, 1)         # (H, 1)
    fcw = params["fc_w"].reshape(D, 1)
    fcb = params["fc_b"].reshape(1, 1)

    kernel = functools.partial(
        _fused_kernel, order=order, field_p=field_p, field_q=field_q,
        fuse_rows=fuse_rows)

    out = pl.pallas_call(
        kernel,
        out_shape=jax.ShapeDtypeStruct((1, B), jnp.float32),
        grid=grid,
        in_specs=[
            pl.BlockSpec((F, D, TILE_B), lambda b: (0, 0, b)),
            # Grid-invariant index maps -> weights stay resident in VMEM.
            pl.BlockSpec((order, H, D), lambda b: (0, 0, 0)),
            pl.BlockSpec((order, H, 1), lambda b: (0, 0, 0)),
            pl.BlockSpec((order, H, 1), lambda b: (0, 0, 0)),
            pl.BlockSpec((H, D), lambda b: (0, 0)),
            pl.BlockSpec((H, 1), lambda b: (0, 0)),
            pl.BlockSpec((H, 1), lambda b: (0, 0)),
            pl.BlockSpec((D, 1), lambda b: (0, 0)),
            pl.BlockSpec(memory_space=pltpu.MemorySpace.SMEM),
        ],
        out_specs=pl.BlockSpec((1, TILE_B), lambda b: (0, b)),
        compiler_params=pltpu.CompilerParams(
            dimension_semantics=("parallel",),
            vmem_limit_bytes=32 * 1024 * 1024,
        ),
    )(x_t, cw1t, cb1, cw2, aw1t, ab1c, aw2c, fcw, fcb)

    return out.reshape(B, 1)


# ----------------------------------------------------------------------------
# Pure-JAX reference (mirrors the PyTorch module) and parameter init
# ----------------------------------------------------------------------------
def _reference_forward(feature_emb, params, field_p, field_q, order):
    def att_agg(X, w1, b1, w2):            # X: (B, N, D)
        h = jnp.maximum(X @ w1 + b1, 0.0)  # (B, N, H)
        sc = h @ w2                        # (B, N, 1)
        att = jax.nn.softmax(sc, axis=1)
        return jnp.sum(att * X, axis=1)    # (B, D)

    fp = jnp.asarray(field_p, jnp.int32)
    fq = jnp.asarray(field_q, jnp.int32)
    x0 = feature_emb
    xi = x0
    pooled = []
    for i in range(order):
        if i == 0:
            cp = jnp.take(x0, fp, axis=1) * jnp.take(xi, fq, axis=1)
        else:
            cp = x0 * xi
        w1, b1, w2 = params["cross"][i]
        cr = att_agg(cp, w1, b1, w2)
        xi = cr[:, None, :] * x0 + xi
        pooled.append(cr)
    U = jnp.stack(pooled, axis=1)
    aw1, ab1, aw2 = params["attn"]
    u = att_agg(U, aw1, ab1, aw2)
    return u @ params["fc_w"] + params["fc_b"]


def _linear_init(key, fan_in, fan_out, bias=True):
    kw, kb = jax.random.split(key)
    bound = 1.0 / jnp.sqrt(fan_in)
    w = jax.random.uniform(kw, (fan_in, fan_out), jnp.float32, -bound, bound)
    if bias:
        b = jax.random.uniform(kb, (1, fan_out), jnp.float32, -bound, bound)
        return w, b
    return w, None


def make_params(key, embedding_dim, hidden_dim, order):
    keys = jax.random.split(key, order + 2)
    cross = []
    for i in range(order):
        k1, k2 = jax.random.split(keys[i])
        w1, b1 = _linear_init(k1, embedding_dim, hidden_dim, bias=True)
        w2, _ = _linear_init(k2, hidden_dim, 1, bias=False)
        cross.append((w1, b1, w2))
    k1, k2 = jax.random.split(keys[order])
    aw1, ab1 = _linear_init(k1, embedding_dim, hidden_dim, bias=True)
    aw2, _ = _linear_init(k2, hidden_dim, 1, bias=False)
    fc_w, fc_b = _linear_init(keys[order + 1], embedding_dim, 1, bias=True)
    return {
        "cross": cross,
        "attn": (aw1, ab1, aw2),
        "fc_w": fc_w,
        "fc_b": fc_b,
    }


# ----------------------------------------------------------------------------
if __name__ == "__main__":
    B = 2
    num_fields = 4
    embedding_dim = 16
    hidden_dim = 32
    order = 2

    key = jax.random.PRNGKey(0)
    k_x, k_p = jax.random.split(key)
    feature_emb = jax.random.normal(
        k_x, (B, num_fields, embedding_dim), jnp.float32
    )
    params = make_params(k_p, embedding_dim, hidden_dim, order)

    p, q = zip(*list(combinations(range(num_fields), 2)))

    out = cross_net_attention_forward(feature_emb, params, p, q, order)
    out = jax.block_until_ready(out)
    assert out.shape == (B, 1), out.shape

    ref = _reference_forward(feature_emb, params, p, q, order)
    assert jnp.allclose(out, ref, rtol=1e-4, atol=1e-5), (out, ref)

    print("KERNEL_OK")
</pallas_src>

<mosaic_0001>
module attributes {stable_mosaic.version = 11 : i64} {
  func.func @_fused_kernel(%arg0: i32, %arg1: memref<4x16x2xf32, #tpu.memory_space<vmem>>, %arg2: memref<2x32x16xf32, #tpu.memory_space<vmem>>, %arg3: memref<2x32x1xf32, #tpu.memory_space<vmem>>, %arg4: memref<2x32x1xf32, #tpu.memory_space<vmem>>, %arg5: memref<32x16xf32, #tpu.memory_space<vmem>>, %arg6: memref<32x1xf32, #tpu.memory_space<vmem>>, %arg7: memref<32x1xf32, #tpu.memory_space<vmem>>, %arg8: memref<16x1xf32, #tpu.memory_space<vmem>>, %arg9: memref<1x1xf32, #tpu.memory_space<smem>>, %arg10: memref<1x2xf32, #tpu.memory_space<vmem>>) attributes {dimension_semantics = [#tpu.dimension_semantics<parallel>], iteration_bounds = array<i64: 1>, scalar_prefetch = 0 : i64, scratch_operands = 0 : i64, tpu.core_type = #tpu.core_type<tc>, window_params = [{transform_indices = @transform_0, window_bounds = array<i64: 4, 16, 2>}, {pipeline_mode = #tpu.pipeline_mode<synchronous>, transform_indices = @transform_1, window_bounds = array<i64: 2, 32, 16>}, {pipeline_mode = #tpu.pipeline_mode<synchronous>, transform_indices = @transform_2, window_bounds = array<i64: 2, 32, 1>}, {pipeline_mode = #tpu.pipeline_mode<synchronous>, transform_indices = @transform_3, window_bounds = array<i64: 2, 32, 1>}, {pipeline_mode = #tpu.pipeline_mode<synchronous>, transform_indices = @transform_4, window_bounds = array<i64: 32, 16>}, {pipeline_mode = #tpu.pipeline_mode<synchronous>, transform_indices = @transform_5, window_bounds = array<i64: 32, 1>}, {pipeline_mode = #tpu.pipeline_mode<synchronous>, transform_indices = @transform_6, window_bounds = array<i64: 32, 1>}, {pipeline_mode = #tpu.pipeline_mode<synchronous>, transform_indices = @transform_7, window_bounds = array<i64: 16, 1>}, {transform_indices = @transform_8, window_bounds = array<i64: 1, 1>}, {transform_indices = @transform_9, window_bounds = array<i64: 1, 2>}]} {
    %c0 = arith.constant 0 : index
    %c0_0 = arith.constant 0 : index
    %c0_1 = arith.constant 0 : index
    %0 = vector.load %arg2[%c0, %c0_0, %c0_1] : memref<2x32x16xf32, #tpu.memory_space<vmem>>, vector<1x32x16xf32>
    %1 = vector.shape_cast %0 : vector<1x32x16xf32> to vector<32x16xf32>
    %c0_2 = arith.constant 0 : index
    %c0_3 = arith.constant 0 : index
    %c0_4 = arith.constant 0 : index
    %2 = vector.load %arg3[%c0_2, %c0_3, %c0_4] : memref<2x32x1xf32, #tpu.memory_space<vmem>>, vector<1x32x1xf32>
    %3 = vector.shape_cast %2 : vector<1x32x1xf32> to vector<32x1xf32>
    %c0_5 = arith.constant 0 : index
    %c0_6 = arith.constant 0 : index
    %c0_7 = arith.constant 0 : index
    %4 = vector.load %arg4[%c0_5, %c0_6, %c0_7] : memref<2x32x1xf32, #tpu.memory_space<vmem>>, vector<1x32x1xf32>
    %5 = vector.shape_cast %4 : vector<1x32x1xf32> to vector<32x1xf32>
    %c0_8 = arith.constant 0 : index
    %c0_9 = arith.constant 0 : index
    %c0_10 = arith.constant 0 : index
    %6 = vector.load %arg1[%c0_8, %c0_9, %c0_10] : memref<4x16x2xf32, #tpu.memory_space<vmem>>, vector<1x16x2xf32>
    %7 = vector.shape_cast %6 : vector<1x16x2xf32> to vector<16x2xf32>
    %c1 = arith.constant 1 : index
    %c0_11 = arith.constant 0 : index
    %c0_12 = arith.constant 0 : index
    %8 = vector.load %arg1[%c1, %c0_11, %c0_12] : memref<4x16x2xf32, #tpu.memory_space<vmem>>, vector<1x16x2xf32>
    %9 = vector.shape_cast %8 : vector<1x16x2xf32> to vector<16x2xf32>
    %10 = arith.mulf %7, %9 : vector<16x2xf32>
    %cst = arith.constant dense<0.000000e+00> : vector<32x2xf32>
    %11 = tpu.matmul %1, %10, %cst {dimension_numbers = #tpu.dot_dimension_numbers<[1], [0], [0], [1], [0, 0, 1, 1], [], []>} : vector<32x16xf32>, vector<16x2xf32>, vector<32x2xf32> -> vector<32x2xf32>
    %12 = vector.broadcast %3 : vector<32x1xf32> to vector<32x2xf32>
    %13 = arith.addf %11, %12 : vector<32x2xf32>
    %cst_13 = arith.constant 0.000000e+00 : f32
    %14 = vector.broadcast %cst_13 : f32 to vector<32x2xf32>
    %15 = arith.maximumf %13, %14 : vector<32x2xf32>
    %16 = vector.broadcast %5 : vector<32x1xf32> to vector<32x2xf32>
    %17 = arith.mulf %15, %16 : vector<32x2xf32>
    %cst_14 = arith.constant dense<0.000000e+00> : vector<2xf32>
    %18 = vector.multi_reduction <add>, %17, %cst_14 [0] : vector<32x2xf32> to vector<2xf32>
    %19 = vector.shape_cast %18 : vector<2xf32> to vector<1x2xf32>
    %c0_15 = arith.constant 0 : index
    %c0_16 = arith.constant 0 : index
    %c0_17 = arith.constant 0 : index
    %20 = vector.load %arg1[%c0_15, %c0_16, %c0_17] : memref<4x16x2xf32, #tpu.memory_space<vmem>>, vector<1x16x2xf32>
    %21 = vector.shape_cast %20 : vector<1x16x2xf32> to vector<16x2xf32>
    %c2 = arith.constant 2 : index
    %c0_18 = arith.constant 0 : index
    %c0_19 = arith.constant 0 : index
    %22 = vector.load %arg1[%c2, %c0_18, %c0_19] : memref<4x16x2xf32, #tpu.memory_space<vmem>>, vector<1x16x2xf32>
    %23 = vector.shape_cast %22 : vector<1x16x2xf32> to vector<16x2xf32>
    %24 = arith.mulf %21, %23 : vector<16x2xf32>
    %cst_20 = arith.constant dense<0.000000e+00> : vector<32x2xf32>
    %25 = tpu.matmul %1, %24, %cst_20 {dimension_numbers = #tpu.dot_dimension_numbers<[1], [0], [0], [1], [0, 0, 1, 1], [], []>} : vector<32x16xf32>, vector<16x2xf32>, vector<32x2xf32> -> vector<32x2xf32>
    %26 = vector.broadcast %3 : vector<32x1xf32> to vector<32x2xf32>
    %27 = arith.addf %25, %26 : vector<32x2xf32>
    %cst_21 = arith.constant 0.000000e+00 : f32
    %28 = vector.broadcast %cst_21 : f32 to vector<32x2xf32>
    %29 = arith.maximumf %27, %28 : vector<32x2xf32>
    %30 = vector.broadcast %5 : vector<32x1xf32> to vector<32x2xf32>
    %31 = arith.mulf %29, %30 : vector<32x2xf32>
    %cst_22 = arith.constant dense<0.000000e+00> : vector<2xf32>
    %32 = vector.multi_reduction <add>, %31, %cst_22 [0] : vector<32x2xf32> to vector<2xf32>
    %33 = vector.shape_cast %32 : vector<2xf32> to vector<1x2xf32>
    %c0_23 = arith.constant 0 : index
    %c0_24 = arith.constant 0 : index
    %c0_25 = arith.constant 0 : index
    %34 = vector.load %arg1[%c0_23, %c0_24, %c0_25] : memref<4x16x2xf32, #tpu.memory_space<vmem>>, vector<1x16x2xf32>
    %35 = vector.shape_cast %34 : vector<1x16x2xf32> to vector<16x2xf32>
    %c3 = arith.constant 3 : index
    %c0_26 = arith.constant 0 : index
    %c0_27 = arith.constant 0 : index
    %36 = vector.load %arg1[%c3, %c0_26, %c0_27] : memref<4x16x2xf32, #tpu.memory_space<vmem>>, vector<1x16x2xf32>
    %37 = vector.shape_cast %36 : vector<1x16x2xf32> to vector<16x2xf32>
    %38 = arith.mulf %35, %37 : vector<16x2xf32>
    %cst_28 = arith.constant dense<0.000000e+00> : vector<32x2xf32>
    %39 = tpu.matmul %1, %38, %cst_28 {dimension_numbers = #tpu.dot_dimension_numbers<[1], [0], [0], [1], [0, 0, 1, 1], [], []>} : vector<32x16xf32>, vector<16x2xf32>, vector<32x2xf32> -> vector<32x2xf32>
    %40 = vector.broadcast %3 : vector<32x1xf32> to vector<32x2xf32>
    %41 = arith.addf %39, %40 : vector<32x2xf32>
    %cst_29 = arith.constant 0.000000e+00 : f32
    %42 = vector.broadcast %cst_29 : f32 to vector<32x2xf32>
    %43 = arith.maximumf %41, %42 : vector<32x2xf32>
    %44 = vector.broadcast %5 : vector<32x1xf32> to vector<32x2xf32>
    %45 = arith.mulf %43, %44 : vector<32x2xf32>
    %cst_30 = arith.constant dense<0.000000e+00> : vector<2xf32>
    %46 = vector.multi_reduction <add>, %45, %cst_30 [0] : vector<32x2xf32> to vector<2xf32>
    %47 = vector.shape_cast %46 : vector<2xf32> to vector<1x2xf32>
    %c1_31 = arith.constant 1 : index
    %c0_32 = arith.constant 0 : index
    %c0_33 = arith.constant 0 : index
    %48 = vector.load %arg1[%c1_31, %c0_32, %c0_33] : memref<4x16x2xf32, #tpu.memory_space<vmem>>, vector<1x16x2xf32>
    %49 = vector.shape_cast %48 : vector<1x16x2xf32> to vector<16x2xf32>
    %c2_34 = arith.constant 2 : index
    %c0_35 = arith.constant 0 : index
    %c0_36 = arith.constant 0 : index
    %50 = vector.load %arg1[%c2_34, %c0_35, %c0_36] : memref<4x16x2xf32, #tpu.memory_space<vmem>>, vector<1x16x2xf32>
    %51 = vector.shape_cast %50 : vector<1x16x2xf32> to vector<16x2xf32>
    %52 = arith.mulf %49, %51 : vector<16x2xf32>
    %cst_37 = arith.constant dense<0.000000e+00> : vector<32x2xf32>
    %53 = tpu.matmul %1, %52, %cst_37 {dimension_numbers = #tpu.dot_dimension_numbers<[1], [0], [0], [1], [0, 0, 1, 1], [], []>} : vector<32x16xf32>, vector<16x2xf32>, vector<32x2xf32> -> vector<32x2xf32>
    %54 = vector.broadcast %3 : vector<32x1xf32> to vector<32x2xf32>
    %55 = arith.addf %53, %54 : vector<32x2xf32>
    %cst_38 = arith.constant 0.000000e+00 : f32
    %56 = vector.broadcast %cst_38 : f32 to vector<32x2xf32>
    %57 = arith.maximumf %55, %56 : vector<32x2xf32>
    %58 = vector.broadcast %5 : vector<32x1xf32> to vector<32x2xf32>
    %59 = arith.mulf %57, %58 : vector<32x2xf32>
    %cst_39 = arith.constant dense<0.000000e+00> : vector<2xf32>
    %60 = vector.multi_reduction <add>, %59, %cst_39 [0] : vector<32x2xf32> to vector<2xf32>
    %61 = vector.shape_cast %60 : vector<2xf32> to vector<1x2xf32>
    %c1_40 = arith.constant 1 : index
    %c0_41 = arith.constant 0 : index
    %c0_42 = arith.constant 0 : index
    %62 = vector.load %arg1[%c1_40, %c0_41, %c0_42] : memref<4x16x2xf32, #tpu.memory_space<vmem>>, vector<1x16x2xf32>
    %63 = vector.shape_cast %62 : vector<1x16x2xf32> to vector<16x2xf32>
    %c3_43 = arith.constant 3 : index
    %c0_44 = arith.constant 0 : index
    %c0_45 = arith.constant 0 : index
    %64 = vector.load %arg1[%c3_43, %c0_44, %c0_45] : memref<4x16x2xf32, #tpu.memory_space<vmem>>, vector<1x16x2xf32>
    %65 = vector.shape_cast %64 : vector<1x16x2xf32> to vector<16x2xf32>
    %66 = arith.mulf %63, %65 : vector<16x2xf32>
    %cst_46 = arith.constant dense<0.000000e+00> : vector<32x2xf32>
    %67 = tpu.matmul %1, %66, %cst_46 {dimension_numbers = #tpu.dot_dimension_numbers<[1], [0], [0], [1], [0, 0, 1, 1], [], []>} : vector<32x16xf32>, vector<16x2xf32>, vector<32x2xf32> -> vector<32x2xf32>
    %68 = vector.broadcast %3 : vector<32x1xf32> to vector<32x2xf32>
    %69 = arith.addf %67, %68 : vector<32x2xf32>
    %cst_47 = arith.constant 0.000000e+00 : f32
    %70 = vector.broadcast %cst_47 : f32 to vector<32x2xf32>
    %71 = arith.maximumf %69, %70 : vector<32x2xf32>
    %72 = vector.broadcast %5 : vector<32x1xf32> to vector<32x2xf32>
    %73 = arith.mulf %71, %72 : vector<32x2xf32>
    %cst_48 = arith.constant dense<0.000000e+00> : vector<2xf32>
    %74 = vector.multi_reduction <add>, %73, %cst_48 [0] : vector<32x2xf32> to vector<2xf32>
    %75 = vector.shape_cast %74 : vector<2xf32> to vector<1x2xf32>
    %c2_49 = arith.constant 2 : index
    %c0_50 = arith.constant 0 : index
    %c0_51 = arith.constant 0 : index
    %76 = vector.load %arg1[%c2_49, %c0_50, %c0_51] : memref<4x16x2xf32, #tpu.memory_space<vmem>>, vector<1x16x2xf32>
    %77 = vector.shape_cast %76 : vector<1x16x2xf32> to vector<16x2xf32>
    %c3_52 = arith.constant 3 : index
    %c0_53 = arith.constant 0 : index
    %c0_54 = arith.constant 0 : index
    %78 = vector.load %arg1[%c3_52, %c0_53, %c0_54] : memref<4x16x2xf32, #tpu.memory_space<vmem>>, vector<1x16x2xf32>
    %79 = vector.shape_cast %78 : vector<1x16x2xf32> to vector<16x2xf32>
    %80 = arith.mulf %77, %79 : vector<16x2xf32>
    %cst_55 = arith.constant dense<0.000000e+00> : vector<32x2xf32>
    %81 = tpu.matmul %1, %80, %cst_55 {dimension_numbers = #tpu.dot_dimension_numbers<[1], [0], [0], [1], [0, 0, 1, 1], [], []>} : vector<32x16xf32>, vector<16x2xf32>, vector<32x2xf32> -> vector<32x2xf32>
    %82 = vector.broadcast %3 : vector<32x1xf32> to vector<32x2xf32>
    %83 = arith.addf %81, %82 : vector<32x2xf32>
    %cst_56 = arith.constant 0.000000e+00 : f32
    %84 = vector.broadcast %cst_56 : f32 to vector<32x2xf32>
    %85 = arith.maximumf %83, %84 : vector<32x2xf32>
    %86 = vector.broadcast %5 : vector<32x1xf32> to vector<32x2xf32>
    %87 = arith.mulf %85, %86 : vector<32x2xf32>
    %cst_57 = arith.constant dense<0.000000e+00> : vector<2xf32>
    %88 = vector.multi_reduction <add>, %87, %cst_57 [0] : vector<32x2xf32> to vector<2xf32>
    %89 = vector.shape_cast %88 : vector<2xf32> to vector<1x2xf32>
    %90 = arith.maximumf %19, %33 : vector<1x2xf32>
    %91 = arith.maximumf %90, %47 : vector<1x2xf32>
    %92 = arith.maximumf %91, %61 : vector<1x2xf32>
    %93 = arith.maximumf %92, %75 : vector<1x2xf32>
    %94 = arith.maximumf %93, %89 : vector<1x2xf32>
    %95 = arith.subf %19, %94 : vector<1x2xf32>
    %96 = math.exp %95 : vector<1x2xf32>
    %97 = arith.subf %33, %94 : vector<1x2xf32>
    %98 = math.exp %97 : vector<1x2xf32>
    %99 = arith.subf %47, %94 : vector<1x2xf32>
    %100 = math.exp %99 : vector<1x2xf32>
    %101 = arith.subf %61, %94 : vector<1x2xf32>
    %102 = math.exp %101 : vector<1x2xf32>
    %103 = arith.subf %75, %94 : vector<1x2xf32>
    %104 = math.exp %103 : vector<1x2xf32>
    %105 = arith.subf %89, %94 : vector<1x2xf32>
    %106 = math.exp %105 : vector<1x2xf32>
    %107 = arith.addf %96, %98 : vector<1x2xf32>
    %108 = arith.addf %107, %100 : vector<1x2xf32>
    %109 = arith.addf %108, %102 : vector<1x2xf32>
    %110 = arith.addf %109, %104 : vector<1x2xf32>
    %111 = arith.addf %110, %106 : vector<1x2xf32>
    %112 = tpu.reciprocal %111 : vector<1x2xf32> -> vector<1x2xf32>
    %113 = arith.mulf %96, %112 : vector<1x2xf32>
    %c0_58 = arith.constant 0 : index
    %c0_59 = arith.constant 0 : index
    %c0_60 = arith.constant 0 : index
    %114 = vector.load %arg1[%c0_58, %c0_59, %c0_60] : memref<4x16x2xf32, #tpu.memory_space<vmem>>, vector<1x16x2xf32>
    %115 = vector.shape_cast %114 : vector<1x16x2xf32> to vector<16x2xf32>
    %c1_61 = arith.constant 1 : index
    %c0_62 = arith.constant 0 : index
    %c0_63 = arith.constant 0 : index
    %116 = vector.load %arg1[%c1_61, %c0_62, %c0_63] : memref<4x16x2xf32, #tpu.memory_space<vmem>>, vector<1x16x2xf32>
    %117 = vector.shape_cast %116 : vector<1x16x2xf32> to vector<16x2xf32>
    %118 = arith.mulf %115, %117 : vector<16x2xf32>
    %119 = vector.broadcast %113 : vector<1x2xf32> to vector<16x2xf32>
    %120 = arith.mulf %119, %118 : vector<16x2xf32>
    %121 = arith.mulf %98, %112 : vector<1x2xf32>
    %c0_64 = arith.constant 0 : index
    %c0_65 = arith.constant 0 : index
    %c0_66 = arith.constant 0 : index
    %122 = vector.load %arg1[%c0_64, %c0_65, %c0_66] : memref<4x16x2xf32, #tpu.memory_space<vmem>>, vector<1x16x2xf32>
    %123 = vector.shape_cast %122 : vector<1x16x2xf32> to vector<16x2xf32>
    %c2_67 = arith.constant 2 : index
    %c0_68 = arith.constant 0 : index
    %c0_69 = arith.constant 0 : index
    %124 = vector.load %arg1[%c2_67, %c0_68, %c0_69] : memref<4x16x2xf32, #tpu.memory_space<vmem>>, vector<1x16x2xf32>
    %125 = vector.shape_cast %124 : vector<1x16x2xf32> to vector<16x2xf32>
    %126 = arith.mulf %123, %125 : vector<16x2xf32>
    %127 = vector.broadcast %121 : vector<1x2xf32> to vector<16x2xf32>
    %128 = arith.mulf %127, %126 : vector<16x2xf32>
    %129 = arith.addf %120, %128 : vector<16x2xf32>
    %130 = arith.mulf %100, %112 : vector<1x2xf32>
    %c0_70 = arith.constant 0 : index
    %c0_71 = arith.constant 0 : index
    %c0_72 = arith.constant 0 : index
    %131 = vector.load %arg1[%c0_70, %c0_71, %c0_72] : memref<4x16x2xf32, #tpu.memory_space<vmem>>, vector<1x16x2xf32>
    %132 = vector.shape_cast %131 : vector<1x16x2xf32> to vector<16x2xf32>
    %c3_73 = arith.constant 3 : index
    %c0_74 = arith.constant 0 : index
    %c0_75 = arith.constant 0 : index
    %133 = vector.load %arg1[%c3_73, %c0_74, %c0_75] : memref<4x16x2xf32, #tpu.memory_space<vmem>>, vector<1x16x2xf32>
    %134 = vector.shape_cast %133 : vector<1x16x2xf32> to vector<16x2xf32>
    %135 = arith.mulf %132, %134 : vector<16x2xf32>
    %136 = vector.broadcast %130 : vector<1x2xf32> to vector<16x2xf32>
    %137 = arith.mulf %136, %135 : vector<16x2xf32>
    %138 = arith.addf %129, %137 : vector<16x2xf32>
    %139 = arith.mulf %102, %112 : vector<1x2xf32>
    %c1_76 = arith.constant 1 : index
    %c0_77 = arith.constant 0 : index
    %c0_78 = arith.constant 0 : index
    %140 = vector.load %arg1[%c1_76, %c0_77, %c0_78] : memref<4x16x2xf32, #tpu.memory_space<vmem>>, vector<1x16x2xf32>
    %141 = vector.shape_cast %140 : vector<1x16x2xf32> to vector<16x2xf32>
    %c2_79 = arith.constant 2 : index
    %c0_80 = arith.constant 0 : index
    %c0_81 = arith.constant 0 : index
    %142 = vector.load %arg1[%c2_79, %c0_80, %c0_81] : memref<4x16x2xf32, #tpu.memory_space<vmem>>, vector<1x16x2xf32>
    %143 = vector.shape_cast %142 : vector<1x16x2xf32> to vector<16x2xf32>
    %144 = arith.mulf %141, %143 : vector<16x2xf32>
    %145 = vector.broadcast %139 : vector<1x2xf32> to vector<16x2xf32>
    %146 = arith.mulf %145, %144 : vector<16x2xf32>
    %147 = arith.addf %138, %146 : vector<16x2xf32>
    %148 = arith.mulf %104, %112 : vector<1x2xf32>
    %c1_82 = arith.constant 1 : index
    %c0_83 = arith.constant 0 : index
    %c0_84 = arith.constant 0 : index
    %149 = vector.load %arg1[%c1_82, %c0_83, %c0_84] : memref<4x16x2xf32, #tpu.memory_space<vmem>>, vector<1x16x2xf32>
    %150 = vector.shape_cast %149 : vector<1x16x2xf32> to vector<16x2xf32>
    %c3_85 = arith.constant 3 : index
    %c0_86 = arith.constant 0 : index
    %c0_87 = arith.constant 0 : index
    %151 = vector.load %arg1[%c3_85, %c0_86, %c0_87] : memref<4x16x2xf32, #tpu.memory_space<vmem>>, vector<1x16x2xf32>
    %152 = vector.shape_cast %151 : vector<1x16x2xf32> to vector<16x2xf32>
    %153 = arith.mulf %150, %152 : vector<16x2xf32>
    %154 = vector.broadcast %148 : vector<1x2xf32> to vector<16x2xf32>
    %155 = arith.mulf %154, %153 : vector<16x2xf32>
    %156 = arith.addf %147, %155 : vector<16x2xf32>
    %157 = arith.mulf %106, %112 : vector<1x2xf32>
    %c2_88 = arith.constant 2 : index
    %c0_89 = arith.constant 0 : index
    %c0_90 = arith.constant 0 : index
    %158 = vector.load %arg1[%c2_88, %c0_89, %c0_90] : memref<4x16x2xf32, #tpu.memory_space<vmem>>, vector<1x16x2xf32>
    %159 = vector.shape_cast %158 : vector<1x16x2xf32> to vector<16x2xf32>
    %c3_91 = arith.constant 3 : index
    %c0_92 = arith.constant 0 : index
    %c0_93 = arith.constant 0 : index
    %160 = vector.load %arg1[%c3_91, %c0_92, %c0_93] : memref<4x16x2xf32, #tpu.memory_space<vmem>>, vector<1x16x2xf32>
    %161 = vector.shape_cast %160 : vector<1x16x2xf32> to vector<16x2xf32>
    %162 = arith.mulf %159, %161 : vector<16x2xf32>
    %163 = vector.broadcast %157 : vector<1x2xf32> to vector<16x2xf32>
    %164 = arith.mulf %163, %162 : vector<16x2xf32>
    %165 = arith.addf %156, %164 : vector<16x2xf32>
    %cst_94 = arith.constant 1.000000e+00 : f32
    %166 = vector.broadcast %cst_94 : f32 to vector<16x2xf32>
    %167 = arith.addf %166, %165 : vector<16x2xf32>
    %c1_95 = arith.constant 1 : index
    %c0_96 = arith.constant 0 : index
    %c0_97 = arith.constant 0 : index
    %168 = vector.load %arg2[%c1_95, %c0_96, %c0_97] : memref<2x32x16xf32, #tpu.memory_space<vmem>>, vector<1x32x16xf32>
    %169 = vector.shape_cast %168 : vector<1x32x16xf32> to vector<32x16xf32>
    %c1_98 = arith.constant 1 : index
    %c0_99 = arith.constant 0 : index
    %c0_100 = arith.constant 0 : index
    %170 = vector.load %arg3[%c1_98, %c0_99, %c0_100] : memref<2x32x1xf32, #tpu.memory_space<vmem>>, vector<1x32x1xf32>
    %171 = vector.shape_cast %170 : vector<1x32x1xf32> to vector<32x1xf32>
    %c1_101 = arith.constant 1 : index
    %c0_102 = arith.constant 0 : index
    %c0_103 = arith.constant 0 : index
    %172 = vector.load %arg4[%c1_101, %c0_102, %c0_103] : memref<2x32x1xf32, #tpu.memory_space<vmem>>, vector<1x32x1xf32>
    %173 = vector.shape_cast %172 : vector<1x32x1xf32> to vector<32x1xf32>
    %c0_104 = arith.constant 0 : index
    %c0_105 = arith.constant 0 : index
    %c0_106 = arith.constant 0 : index
    %174 = vector.load %arg1[%c0_104, %c0_105, %c0_106] : memref<4x16x2xf32, #tpu.memory_space<vmem>>, vector<1x16x2xf32>
    %175 = vector.shape_cast %174 : vector<1x16x2xf32> to vector<16x2xf32>
    %176 = arith.mulf %175, %175 : vector<16x2xf32>
    %177 = arith.mulf %176, %167 : vector<16x2xf32>
    %cst_107 = arith.constant dense<0.000000e+00> : vector<32x2xf32>
    %178 = tpu.matmul %169, %177, %cst_107 {dimension_numbers = #tpu.dot_dimension_numbers<[1], [0], [0], [1], [0, 0, 1, 1], [], []>} : vector<32x16xf32>, vector<16x2xf32>, vector<32x2xf32> -> vector<32x2xf32>
    %179 = vector.broadcast %171 : vector<32x1xf32> to vector<32x2xf32>
    %180 = arith.addf %178, %179 : vector<32x2xf32>
    %cst_108 = arith.constant 0.000000e+00 : f32
    %181 = vector.broadcast %cst_108 : f32 to vector<32x2xf32>
    %182 = arith.maximumf %180, %181 : vector<32x2xf32>
    %183 = vector.broadcast %173 : vector<32x1xf32> to vector<32x2xf32>
    %184 = arith.mulf %182, %183 : vector<32x2xf32>
    %cst_109 = arith.constant dense<0.000000e+00> : vector<2xf32>
    %185 = vector.multi_reduction <add>, %184, %cst_109 [0] : vector<32x2xf32> to vector<2xf32>
    %186 = vector.shape_cast %185 : vector<2xf32> to vector<1x2xf32>
    %c1_110 = arith.constant 1 : index
    %c0_111 = arith.constant 0 : index
    %c0_112 = arith.constant 0 : index
    %187 = vector.load %arg1[%c1_110, %c0_111, %c0_112] : memref<4x16x2xf32, #tpu.memory_space<vmem>>, vector<1x16x2xf32>
    %188 = vector.shape_cast %187 : vector<1x16x2xf32> to vector<16x2xf32>
    %189 = arith.mulf %188, %188 : vector<16x2xf32>
    %190 = arith.mulf %189, %167 : vector<16x2xf32>
    %cst_113 = arith.constant dense<0.000000e+00> : vector<32x2xf32>
    %191 = tpu.matmul %169, %190, %cst_113 {dimension_numbers = #tpu.dot_dimension_numbers<[1], [0], [0], [1], [0, 0, 1, 1], [], []>} : vector<32x16xf32>, vector<16x2xf32>, vector<32x2xf32> -> vector<32x2xf32>
    %192 = vector.broadcast %171 : vector<32x1xf32> to vector<32x2xf32>
    %193 = arith.addf %191, %192 : vector<32x2xf32>
    %cst_114 = arith.constant 0.000000e+00 : f32
    %194 = vector.broadcast %cst_114 : f32 to vector<32x2xf32>
    %195 = arith.maximumf %193, %194 : vector<32x2xf32>
    %196 = vector.broadcast %173 : vector<32x1xf32> to vector<32x2xf32>
    %197 = arith.mulf %195, %196 : vector<32x2xf32>
    %cst_115 = arith.constant dense<0.000000e+00> : vector<2xf32>
    %198 = vector.multi_reduction <add>, %197, %cst_115 [0] : vector<32x2xf32> to vector<2xf32>
    %199 = vector.shape_cast %198 : vector<2xf32> to vector<1x2xf32>
    %c2_116 = arith.constant 2 : index
    %c0_117 = arith.constant 0 : index
    %c0_118 = arith.constant 0 : index
    %200 = vector.load %arg1[%c2_116, %c0_117, %c0_118] : memref<4x16x2xf32, #tpu.memory_space<vmem>>, vector<1x16x2xf32>
    %201 = vector.shape_cast %200 : vector<1x16x2xf32> to vector<16x2xf32>
    %202 = arith.mulf %201, %201 : vector<16x2xf32>
    %203 = arith.mulf %202, %167 : vector<16x2xf32>
    %cst_119 = arith.constant dense<0.000000e+00> : vector<32x2xf32>
    %204 = tpu.matmul %169, %203, %cst_119 {dimension_numbers = #tpu.dot_dimension_numbers<[1], [0], [0], [1], [0, 0, 1, 1], [], []>} : vector<32x16xf32>, vector<16x2xf32>, vector<32x2xf32> -> vector<32x2xf32>
    %205 = vector.broadcast %171 : vector<32x1xf32> to vector<32x2xf32>
    %206 = arith.addf %204, %205 : vector<32x2xf32>
    %cst_120 = arith.constant 0.000000e+00 : f32
    %207 = vector.broadcast %cst_120 : f32 to vector<32x2xf32>
    %208 = arith.maximumf %206, %207 : vector<32x2xf32>
    %209 = vector.broadcast %173 : vector<32x1xf32> to vector<32x2xf32>
    %210 = arith.mulf %208, %209 : vector<32x2xf32>
    %cst_121 = arith.constant dense<0.000000e+00> : vector<2xf32>
    %211 = vector.multi_reduction <add>, %210, %cst_121 [0] : vector<32x2xf32> to vector<2xf32>
    %212 = vector.shape_cast %211 : vector<2xf32> to vector<1x2xf32>
    %c3_122 = arith.constant 3 : index
    %c0_123 = arith.constant 0 : index
    %c0_124 = arith.constant 0 : index
    %213 = vector.load %arg1[%c3_122, %c0_123, %c0_124] : memref<4x16x2xf32, #tpu.memory_space<vmem>>, vector<1x16x2xf32>
    %214 = vector.shape_cast %213 : vector<1x16x2xf32> to vector<16x2xf32>
    %215 = arith.mulf %214, %214 : vector<16x2xf32>
    %216 = arith.mulf %215, %167 : vector<16x2xf32>
    %cst_125 = arith.constant dense<0.000000e+00> : vector<32x2xf32>
    %217 = tpu.matmul %169, %216, %cst_125 {dimension_numbers = #tpu.dot_dimension_numbers<[1], [0], [0], [1], [0, 0, 1, 1], [], []>} : vector<32x16xf32>, vector<16x2xf32>, vector<32x2xf32> -> vector<32x2xf32>
    %218 = vector.broadcast %171 : vector<32x1xf32> to vector<32x2xf32>
    %219 = arith.addf %217, %218 : vector<32x2xf32>
    %cst_126 = arith.constant 0.000000e+00 : f32
    %220 = vector.broadcast %cst_126 : f32 to vector<32x2xf32>
    %221 = arith.maximumf %219, %220 : vector<32x2xf32>
    %222 = vector.broadcast %173 : vector<32x1xf32> to vector<32x2xf32>
    %223 = arith.mulf %221, %222 : vector<32x2xf32>
    %cst_127 = arith.constant dense<0.000000e+00> : vector<2xf32>
    %224 = vector.multi_reduction <add>, %223, %cst_127 [0] : vector<32x2xf32> to vector<2xf32>
    %225 = vector.shape_cast %224 : vector<2xf32> to vector<1x2xf32>
    %226 = arith.maximumf %186, %199 : vector<1x2xf32>
    %227 = arith.maximumf %226, %212 : vector<1x2xf32>
    %228 = arith.maximumf %227, %225 : vector<1x2xf32>
    %229 = arith.subf %186, %228 : vector<1x2xf32>
    %230 = math.exp %229 : vector<1x2xf32>
    %231 = arith.subf %199, %228 : vector<1x2xf32>
    %232 = math.exp %231 : vector<1x2xf32>
    %233 = arith.subf %212, %228 : vector<1x2xf32>
    %234 = math.exp %233 : vector<1x2xf32>
    %235 = arith.subf %225, %228 : vector<1x2xf32>
    %236 = math.exp %235 : vector<1x2xf32>
    %237 = arith.addf %230, %232 : vector<1x2xf32>
    %238 = arith.addf %237, %234 : vector<1x2xf32>
    %239 = arith.addf %238, %236 : vector<1x2xf32>
    %240 = tpu.reciprocal %239 : vector<1x2xf32> -> vector<1x2xf32>
    %241 = arith.mulf %230, %240 : vector<1x2xf32>
    %c0_128 = arith.constant 0 : index
    %c0_129 = arith.constant 0 : index
    %c0_130 = arith.constant 0 : index
    %242 = vector.load %arg1[%c0_128, %c0_129, %c0_130] : memref<4x16x2xf32, #tpu.memory_space<vmem>>, vector<1x16x2xf32>
    %243 = vector.shape_cast %242 : vector<1x16x2xf32> to vector<16x2xf32>
    %244 = arith.mulf %243, %243 : vector<16x2xf32>
    %245 = arith.mulf %244, %167 : vector<16x2xf32>
    %246 = vector.broadcast %241 : vector<1x2xf32> to vector<16x2xf32>
    %247 = arith.mulf %246, %245 : vector<16x2xf32>
    %248 = arith.mulf %232, %240 : vector<1x2xf32>
    %c1_131 = arith.constant 1 : index
    %c0_132 = arith.constant 0 : index
    %c0_133 = arith.constant 0 : index
    %249 = vector.load %arg1[%c1_131, %c0_132, %c0_133] : memref<4x16x2xf32, #tpu.memory_space<vmem>>, vector<1x16x2xf32>
    %250 = vector.shape_cast %249 : vector<1x16x2xf32> to vector<16x2xf32>
    %251 = arith.mulf %250, %250 : vector<16x2xf32>
    %252 = arith.mulf %251, %167 : vector<16x2xf32>
    %253 = vector.broadcast %248 : vector<1x2xf32> to vector<16x2xf32>
    %254 = arith.mulf %253, %252 : vector<16x2xf32>
    %255 = arith.addf %247, %254 : vector<16x2xf32>
    %256 = arith.mulf %234, %240 : vector<1x2xf32>
    %c2_134 = arith.constant 2 : index
    %c0_135 = arith.constant 0 : index
    %c0_136 = arith.constant 0 : index
    %257 = vector.load %arg1[%c2_134, %c0_135, %c0_136] : memref<4x16x2xf32, #tpu.memory_space<vmem>>, vector<1x16x2xf32>
    %258 = vector.shape_cast %257 : vector<1x16x2xf32> to vector<16x2xf32>
    %259 = arith.mulf %258, %258 : vector<16x2xf32>
    %260 = arith.mulf %259, %167 : vector<16x2xf32>
    %261 = vector.broadcast %256 : vector<1x2xf32> to vector<16x2xf32>
    %262 = arith.mulf %261, %260 : vector<16x2xf32>
    %263 = arith.addf %255, %262 : vector<16x2xf32>
    %264 = arith.mulf %236, %240 : vector<1x2xf32>
    %c3_137 = arith.constant 3 : index
    %c0_138 = arith.constant 0 : index
    %c0_139 = arith.constant 0 : index
    %265 = vector.load %arg1[%c3_137, %c0_138, %c0_139] : memref<4x16x2xf32, #tpu.memory_space<vmem>>, vector<1x16x2xf32>
    %266 = vector.shape_cast %265 : vector<1x16x2xf32> to vector<16x2xf32>
    %267 = arith.mulf %266, %266 : vector<16x2xf32>
    %268 = arith.mulf %267, %167 : vector<16x2xf32>
    %269 = vector.broadcast %264 : vector<1x2xf32> to vector<16x2xf32>
    %270 = arith.mulf %269, %268 : vector<16x2xf32>
    %271 = arith.addf %263, %270 : vector<16x2xf32>
    %c0_140 = arith.constant 0 : index
    %c0_141 = arith.constant 0 : index
    %272 = vector.load %arg5[%c0_140, %c0_141] : memref<32x16xf32, #tpu.memory_space<vmem>>, vector<32x16xf32>
    %c0_142 = arith.constant 0 : index
    %c0_143 = arith.constant 0 : index
    %273 = vector.load %arg6[%c0_142, %c0_143] : memref<32x1xf32, #tpu.memory_space<vmem>>, vector<32x1xf32>
    %c0_144 = arith.constant 0 : index
    %c0_145 = arith.constant 0 : index
    %274 = vector.load %arg7[%c0_144, %c0_145] : memref<32x1xf32, #tpu.memory_space<vmem>>, vector<32x1xf32>
    %cst_146 = arith.constant dense<0.000000e+00> : vector<32x2xf32>
    %275 = tpu.matmul %272, %165, %cst_146 {dimension_numbers = #tpu.dot_dimension_numbers<[1], [0], [0], [1], [0, 0, 1, 1], [], []>} : vector<32x16xf32>, vector<16x2xf32>, vector<32x2xf32> -> vector<32x2xf32>
    %276 = vector.broadcast %273 : vector<32x1xf32> to vector<32x2xf32>
    %277 = arith.addf %275, %276 : vector<32x2xf32>
    %cst_147 = arith.constant 0.000000e+00 : f32
    %278 = vector.broadcast %cst_147 : f32 to vector<32x2xf32>
    %279 = arith.maximumf %277, %278 : vector<32x2xf32>
    %280 = vector.broadcast %274 : vector<32x1xf32> to vector<32x2xf32>
    %281 = arith.mulf %279, %280 : vector<32x2xf32>
    %cst_148 = arith.constant dense<0.000000e+00> : vector<2xf32>
    %282 = vector.multi_reduction <add>, %281, %cst_148 [0] : vector<32x2xf32> to vector<2xf32>
    %283 = vector.shape_cast %282 : vector<2xf32> to vector<1x2xf32>
    %cst_149 = arith.constant dense<0.000000e+00> : vector<32x2xf32>
    %284 = tpu.matmul %272, %271, %cst_149 {dimension_numbers = #tpu.dot_dimension_numbers<[1], [0], [0], [1], [0, 0, 1, 1], [], []>} : vector<32x16xf32>, vector<16x2xf32>, vector<32x2xf32> -> vector<32x2xf32>
    %285 = vector.broadcast %273 : vector<32x1xf32> to vector<32x2xf32>
    %286 = arith.addf %284, %285 : vector<32x2xf32>
    %cst_150 = arith.constant 0.000000e+00 : f32
    %287 = vector.broadcast %cst_150 : f32 to vector<32x2xf32>
    %288 = arith.maximumf %286, %287 : vector<32x2xf32>
    %289 = vector.broadcast %274 : vector<32x1xf32> to vector<32x2xf32>
    %290 = arith.mulf %288, %289 : vector<32x2xf32>
    %cst_151 = arith.constant dense<0.000000e+00> : vector<2xf32>
    %291 = vector.multi_reduction <add>, %290, %cst_151 [0] : vector<32x2xf32> to vector<2xf32>
    %292 = vector.shape_cast %291 : vector<2xf32> to vector<1x2xf32>
    %293 = arith.maximumf %283, %292 : vector<1x2xf32>
    %294 = arith.subf %283, %293 : vector<1x2xf32>
    %295 = math.exp %294 : vector<1x2xf32>
    %296 = arith.subf %292, %293 : vector<1x2xf32>
    %297 = math.exp %296 : vector<1x2xf32>
    %298 = arith.addf %295, %297 : vector<1x2xf32>
    %299 = tpu.reciprocal %298 : vector<1x2xf32> -> vector<1x2xf32>
    %300 = arith.mulf %295, %299 : vector<1x2xf32>
    %301 = vector.broadcast %300 : vector<1x2xf32> to vector<16x2xf32>
    %302 = arith.mulf %301, %165 : vector<16x2xf32>
    %303 = arith.mulf %297, %299 : vector<1x2xf32>
    %304 = vector.broadcast %303 : vector<1x2xf32> to vector<16x2xf32>
    %305 = arith.mulf %304, %271 : vector<16x2xf32>
    %306 = arith.addf %302, %305 : vector<16x2xf32>
    %c0_152 = arith.constant 0 : index
    %c0_153 = arith.constant 0 : index
    %307 = vector.load %arg8[%c0_152, %c0_153] : memref<16x1xf32, #tpu.memory_space<vmem>>, vector<16x1xf32>
    %308 = vector.broadcast %307 : vector<16x1xf32> to vector<16x2xf32>
    %309 = arith.mulf %306, %308 : vector<16x2xf32>
    %cst_154 = arith.constant dense<0.000000e+00> : vector<2xf32>
    %310 = vector.multi_reduction <add>, %309, %cst_154 [0] : vector<16x2xf32> to vector<2xf32>
    %311 = vector.shape_cast %310 : vector<2xf32> to vector<1x2xf32>
    %c0_155 = arith.constant 0 : index
    %c0_156 = arith.constant 0 : index
    %312 = memref.load %arg9[%c0_155, %c0_156] : memref<1x1xf32, #tpu.memory_space<smem>>
    %313 = vector.broadcast %312 : f32 to vector<1x2xf32>
    %314 = arith.addf %311, %313 : vector<1x2xf32>
    %c0_157 = arith.constant 0 : index
    %c0_158 = arith.constant 0 : index
    %315 = vector.load %arg10[%c0_157, %c0_158] : memref<1x2xf32, #tpu.memory_space<vmem>>, vector<1x2xf32>
    tpu.vector_store %arg10[%c0_157, %c0_158], %314 {strides = array<i32>} : memref<1x2xf32, #tpu.memory_space<vmem>>, vector<1x2xf32>,
    return
  }
  func.func @transform_0(%arg0: i32) -> (i32, i32, i32) {
    %c0_i32 = arith.constant 0 : i32
    %c0_i32_0 = arith.constant 0 : i32
    %c0_i32_1 = arith.constant 0 : i32
    return %c0_i32, %c0_i32_0, %arg0 : i32, i32, i32
  }
  func.func @transform_1(%arg0: i32) -> (i32, i32, i32) {
    %c0_i32 = arith.constant 0 : i32
    %c0_i32_0 = arith.constant 0 : i32
    %c0_i32_1 = arith.constant 0 : i32
    %c0_i32_2 = arith.constant 0 : i32
    return %c0_i32, %c0_i32_0, %c0_i32_1 : i32, i32, i32
  }
  func.func @transform_2(%arg0: i32) -> (i32, i32, i32) {
    %c0_i32 = arith.constant 0 : i32
    %c0_i32_0 = arith.constant 0 : i32
    %c0_i32_1 = arith.constant 0 : i32
    %c0_i32_2 = arith.constant 0 : i32
    return %c0_i32, %c0_i32_0, %c0_i32_1 : i32, i32, i32
  }
  func.func @transform_3(%arg0: i32) -> (i32, i32, i32) {
    %c0_i32 = arith.constant 0 : i32
    %c0_i32_0 = arith.constant 0 : i32
    %c0_i32_1 = arith.constant 0 : i32
    %c0_i32_2 = arith.constant 0 : i32
    return %c0_i32, %c0_i32_0, %c0_i32_1 : i32, i32, i32
  }
  func.func @transform_4(%arg0: i32) -> (i32, i32) {
    %c0_i32 = arith.constant 0 : i32
    %c0_i32_0 = arith.constant 0 : i32
    %c0_i32_1 = arith.constant 0 : i32
    return %c0_i32, %c0_i32_0 : i32, i32
  }
  func.func @transform_5(%arg0: i32) -> (i32, i32) {
    %c0_i32 = arith.constant 0 : i32
    %c0_i32_0 = arith.constant 0 : i32
    %c0_i32_1 = arith.constant 0 : i32
    return %c0_i32, %c0_i32_0 : i32, i32
  }
  func.func @transform_6(%arg0: i32) -> (i32, i32) {
    %c0_i32 = arith.constant 0 : i32
    %c0_i32_0 = arith.constant 0 : i32
    %c0_i32_1 = arith.constant 0 : i32
    return %c0_i32, %c0_i32_0 : i32, i32
  }
  func.func @transform_7(%arg0: i32) -> (i32, i32) {
    %c0_i32 = arith.constant 0 : i32
    %c0_i32_0 = arith.constant 0 : i32
    %c0_i32_1 = arith.constant 0 : i32
    return %c0_i32, %c0_i32_0 : i32, i32
  }
  func.func @transform_8(%arg0: i32) -> (i32, i32) {
    %c0_i32 = arith.constant 0 : i32
    %c0_i32_0 = arith.constant 0 : i32
    %c0_i32_1 = arith.constant 0 : i32
    return %c0_i32, %c0_i32_0 : i32, i32
  }
  func.func @transform_9(%arg0: i32) -> (i32, i32) {
    %c0_i32 = arith.constant 0 : i32
    %c0_i32_0 = arith.constant 0 : i32
    return %c0_i32, %arg0 : i32, i32
  }
}

</mosaic_0001>

<llo_original>
// kernel: tpu_custom_call.1
$region0: #{tpu_custom_call.1}
  #allocation0 [shape = 'u32[]', space=smem, size = 0x4, offset = 0x4, fixed_abs, tag = 'smem constant byte address 0x4 - core index']
  #allocation1 [shape = 'u32[144,128]{1,0:T(1,128)}', space=vmem, size = 0x12000, scoped, tag = 'internal scratch']
  #allocation2 [shape = 'f32[1,1]{1,0:T(1,128)S(6)}', space=smem, size = 0x200, scoped, tag = 'scoped memory for tpu_custom_call.1']
  %s0 = inlined_call_operand.vmem [shape: f32[4,16,2], index: 0, kind: input, shape index: {}]
  %s1 = inlined_call_operand.vmem [shape: f32[2,32,16], index: 1, kind: input, shape index: {}]
  %s2 = inlined_call_operand.vmem [shape: f32[2,32,1], index: 2, kind: input, shape index: {}]
  %s3 = inlined_call_operand.vmem [shape: f32[2,32,1], index: 3, kind: input, shape index: {}]
  %s4 = inlined_call_operand.vmem [shape: f32[32,16], index: 4, kind: input, shape index: {}]
  %s5 = inlined_call_operand.vmem [shape: f32[32,1], index: 5, kind: input, shape index: {}]
  %s6 = inlined_call_operand.vmem [shape: f32[32,1], index: 6, kind: input, shape index: {}]
  %s7 = inlined_call_operand.vmem [shape: f32[16,1], index: 7, kind: input, shape index: {}]
  %s8 = inlined_call_operand.<no memory space> [shape: f32[1,1], index: 8, kind: input, shape index: {}]
  %s9 = inlined_call_operand.hbm [shape: f32[1,2], index: 9, kind: output, shape index: {}]
  %s10 = sld [smem:[#allocation0]]
  $region46: #{tpu_custom_call.1} parent=0
    _
  %s12 = ssub.s32 1, %s10
  %s13 = scalar_select 0, %s12, %s10
  %14 = sst [smem:[#allocation2]] %s8
  $region1: #{tpu_custom_call.1} parent=0
    #allocation3 [shape = 'u8[512]{0}', space=vmem, size = 0x400, scoped, tag = 'output window, operand 0, single buffered']
    #allocation4 [shape = 's32[1]{0}', space=sflag, size = 0x4, scoped, tag = 'scoped memory for tpu_custom_call.1']
    %15 = vsyncpa [#allocation4], 0
    // Predicated region
    $region2: #{tpu_custom_call.1} parent=1 // pred_check
      _
    $region3: #{tpu_custom_call.1} parent=1 // pred_check_branch
      %17 = sbr.rel (0) target = $region5
    $region4: #{tpu_custom_call.1} parent=1 // pred_region
      _
    $region5: #{tpu_custom_call.1} parent=1 // pred_fallthru
      _
    // Predicated region
    $region6: #{tpu_custom_call.1} parent=1 // pred_check
      _
    $region7: #{tpu_custom_call.1} parent=1 // pred_check_branch
      %19 = sbr.rel (0) target = $region9
    $region8: #{tpu_custom_call.1} parent=1 // pred_region
      _
    $region9: #{tpu_custom_call.1} parent=1 // pred_fallthru
      _
    // Predicated region
    $region10: #{tpu_custom_call.1} parent=1 // pred_check
      _
    $region11: #{tpu_custom_call.1} parent=1 // pred_check_branch
      %21 = sbr.rel (0) target = $region13
    $region12: #{tpu_custom_call.1} parent=1 // pred_region
      _
    $region13: #{tpu_custom_call.1} parent=1 // pred_fallthru
      _
    // Predicated region
    $region14: #{tpu_custom_call.1} parent=1 // pred_check
      _
    $region15: #{tpu_custom_call.1} parent=1 // pred_check_branch
      %23 = sbr.rel (0) target = $region17
    $region16: #{tpu_custom_call.1} parent=1 // pred_region
      _
    $region17: #{tpu_custom_call.1} parent=1 // pred_fallthru
      _
    // Predicated region
    $region18: #{tpu_custom_call.1} parent=1 // pred_check
      _
    $region19: #{tpu_custom_call.1} parent=1 // pred_check_branch
      %25 = sbr.rel (0) target = $region21
    $region20: #{tpu_custom_call.1} parent=1 // pred_region
      _
    $region21: #{tpu_custom_call.1} parent=1 // pred_fallthru
      _
    // Predicated region
    $region22: #{tpu_custom_call.1} parent=1 // pred_check
      _
    $region23: #{tpu_custom_call.1} parent=1 // pred_check_branch
      %27 = sbr.rel (0) target = $region25
    $region24: #{tpu_custom_call.1} parent=1 // pred_region
      _
    $region25: #{tpu_custom_call.1} parent=1 // pred_fallthru
      _
    // Predicated region
    $region26: #{tpu_custom_call.1} parent=1 // pred_check
      _
    $region27: #{tpu_custom_call.1} parent=1 // pred_check_branch
      %29 = sbr.rel (0) target = $region29
    $region28: #{tpu_custom_call.1} parent=1 // pred_region
      _
    $region29: #{tpu_custom_call.1} parent=1 // pred_fallthru
      _
    // Predicated region
    $region30: #{tpu_custom_call.1} parent=1 // pred_check
      _
    $region31: #{tpu_custom_call.1} parent=1 // pred_check_branch
      %31 = sbr.rel (0) target = $region33
    $region32: #{tpu_custom_call.1} parent=1 // pred_region
      _
    $region33: #{tpu_custom_call.1} parent=1 // pred_fallthru
      _
    // Predicated region
    $region34: #{tpu_custom_call.1} parent=1 // pred_check
      _
    $region35: #{tpu_custom_call.1} parent=1 // pred_check_branch
      %33 = sbr.rel (0) target = $region37
    $region36: #{tpu_custom_call.1} parent=1 // pred_region
      _
    $region37: #{tpu_custom_call.1} parent=1 // pred_fallthru
      _
    %v34 = vld [vmem:[%s1] sm:$0xff]
    %v35 = vld [vmem:[%s1 + $0x8] sm:$0xff]
    %v36 = vld [vmem:[%s1 + $0x10] sm:$0xff]
    %v37 = vld [vmem:[%s1 + $0x18] sm:$0xff]
    %v38 = vld [vmem:[%s2] sm:$0xff]
    %v39 = vld [vmem:[%s2 + $0x8] sm:$0xff]
    %v40 = vld [vmem:[%s2 + $0x10] sm:$0xff]
    %v41 = vld [vmem:[%s2 + $0x18] sm:$0xff]
    %v42 = vld [vmem:[%s3] sm:$0xff]
    %v43 = vld [vmem:[%s3 + $0x8] sm:$0xff]
    %v44 = vld [vmem:[%s3 + $0x10] sm:$0xff]
    %v45 = vld [vmem:[%s3 + $0x18] sm:$0xff]
    %v46 = vld [vmem:[%s0] sm:$0xff]
    %v47 = vld [vmem:[%s0 + $0x8] sm:$0xff]
    %s48 = scalar_lea.vmem %s0, 16
    %v49 = vld [vmem:[%s48] sm:$0xff]
    %v50 = vld [vmem:[%s48 + $0x8] sm:$0xff]
    %v51 = vmul.f32 %v46, %v49
    %v52 = vmul.f32 %v47, %v50
    %54 = vset.pattern.permute.xlu0 0
    %55 = vperm.xlu0 %54, %v38
    %v56 = vpop.permute.xlu0 %55
    %59 = vset.pattern.permute.xlu0 0
    %60 = vperm.xlu0 %59, %v39
    %v61 = vpop.permute.xlu0 %60
    %64 = vset.pattern.permute.xlu0 0
    %65 = vperm.xlu0 %64, %v40
    %v66 = vpop.permute.xlu0 %65
    %69 = vset.pattern.permute.xlu0 0
    %70 = vperm.xlu0 %69, %v41
    %v71 = vpop.permute.xlu0 %70
    %vm73 = vcmask 130048
    %v75 = vsel %vm73, %v34, 0
    %v78 = vsel %vm73, %v35, 0
    %v81 = vsel %vm73, %v36, 0
    %v84 = vsel %vm73, %v37, 0
    %86 = vmatprep.subr.mxu0 0.0
    %87 = vmatpush1.msra.mxu0 %v51
    %88 = vmatprep.subr.mxu0 0.0
    %89 = vmatpush1.msra.mxu0 %v52
    %90 = vmatprep.subr.mxu0 0.0
    %91 = vmatpush1.msra.mxu0 0.0
    %92 = vmatprep.subr.mxu0 0.0
    %93 = vmatpush1.msra.mxu0 0.0
    %94 = vmatprep.subr.mxu0 0.0
    %95 = vmatpush1.msra.mxu0 0.0
    %96 = vmatprep.subr.mxu0 0.0
    %97 = vmatpush1.msra.mxu0 0.0
    %98 = vmatprep.subr.mxu0 0.0
    %99 = vmatpush1.msra.mxu0 0.0
    %100 = vmatprep.subr.mxu0 0.0
    %101 = vmatpush1.msra.mxu0 0.0
    %102 = vmatprep.subr.mxu0 0.0
    %103 = vmatpush1.msra.mxu0 0.0
    %104 = vmatprep.subr.mxu0 0.0
    %105 = vmatpush1.msra.mxu0 0.0
    %106 = vmatprep.subr.mxu0 0.0
    %107 = vmatpush1.msra.mxu0 0.0
    %108 = vmatprep.subr.mxu0 0.0
    %109 = vmatpush1.msra.mxu0 0.0
    %110 = vmatprep.subr.mxu0 0.0
    %111 = vmatpush1.msra.mxu0 0.0
    %112 = vmatprep.subr.mxu0 0.0
    %113 = vmatpush1.msra.mxu0 0.0
    %114 = vmatprep.subr.mxu0 0.0
    %115 = vmatpush1.msra.mxu0 0.0
    %116 = vmatprep.subr.mxu0 0.0
    %117 = vmatpush1.msra.mxu0 0.0
    %118 = vmatprep.subr.mxu0 0.0
    %119 = vmatpush1.msra.mxu0 0.0
    %120 = vmatprep.subr.mxu0 0.0
    %121 = vmatpush1.msra.mxu0 0.0
    %122 = vmatprep.subr.mxu0 0.0
    %123 = vmatpush1.msra.mxu0 0.0
    %124 = vmatprep.subr.mxu0 0.0
    %125 = vmatpush1.msra.mxu0 0.0
    %126 = vmatprep.subr.mxu0 0.0
    %127 = vmatpush1.msra.mxu0 0.0
    %128 = vmatprep.subr.mxu0 0.0
    %129 = vmatpush1.msra.mxu0 0.0
    %130 = vmatprep.subr.mxu0 0.0
    %131 = vmatpush1.msra.mxu0 0.0
    %132 = vmatprep.subr.mxu0 0.0
    %133 = vmatpush1.msra.mxu0 0.0
    %134 = vmatprep.subr.mxu0 0.0
    %135 = vmatpush1.msra.mxu0 0.0
    %136 = vmatprep.subr.mxu0 0.0
    %137 = vmatpush1.msra.mxu0 0.0
    %138 = vmatprep.subr.mxu0 0.0
    %139 = vmatpush1.msra.mxu0 0.0
    %140 = vmatprep.subr.mxu0 0.0
    %141 = vmatpush1.msra.mxu0 0.0
    %142 = vmatprep.subr.mxu0 0.0
    %143 = vmatpush1.msra.mxu0 0.0
    %144 = vmatprep.subr.mxu0 0.0
    %145 = vmatpush1.msra.mxu0 0.0
    %146 = vmatprep.subr.mxu0 0.0
    %147 = vmatpush1.msra.mxu0 0.0
    %148 = vmatprep.subr.mxu0 0.0
    %149 = vmatpush1.msra.mxu0 0.0
    %150 = vmatprep.mubr.f32.mxu0 0.0
    %151 = vmatmul.mubr.f32.gmra.mrb[0].mxu0 %v75
    %v152 = vpop.f32.mrb[0].mxu0
    %v153 = vadd.f32 %v56, %v152
    %v154 = vpop.f32.mrb[0].mxu0
    %155 = vmatprep.mubr.f32.mxu0 0.0
    %156 = vmatmul.mubr.f32.gmra.mrb[0].mxu0 %v78
    %v157 = vpop.f32.mrb[0].mxu0
    %v158 = vadd.f32 %v61, %v157
    %v159 = vpop.f32.mrb[0].mxu0
    %160 = vmatprep.mubr.f32.mxu0 0.0
    %161 = vmatmul.mubr.f32.gmra.mrb[0].mxu0 %v81
    %v162 = vpop.f32.mrb[0].mxu0
    %v163 = vadd.f32 %v66, %v162
    %v164 = vpop.f32.mrb[0].mxu0
    %165 = vmatprep.mubr.f32.mxu0 0.0
    %166 = vmatmul.mubr.f32.gmra.mrb[0].mxu0 %v84
    %v167 = vpop.f32.mrb[0].mxu0
    %v168 = vadd.f32 %v71, %v167
    %v169 = vpop.f32.mrb[0].mxu0
    %170 = vdwg.mxu0
    %v171 = vmax.f32 %v153, 0.0
    %v172 = vmax.f32 %v158, 0.0
    %v173 = vmax.f32 %v163, 0.0
    %v174 = vmax.f32 %v168, 0.0
    %176 = vset.pattern.permute.xlu0 0
    %177 = vperm.xlu0 %176, %v42
    %v178 = vpop.permute.xlu0 %177
    %181 = vset.pattern.permute.xlu0 0
    %182 = vperm.xlu0 %181, %v43
    %v183 = vpop.permute.xlu0 %182
    %186 = vset.pattern.permute.xlu0 0
    %187 = vperm.xlu0 %186, %v44
    %v188 = vpop.permute.xlu0 %187
    %191 = vset.pattern.permute.xlu0 0
    %192 = vperm.xlu0 %191, %v45
    %v193 = vpop.permute.xlu0 %192
    %v195 = vmul.f32 %v171, %v178
    %v196 = vmul.f32 %v172, %v183
    %v197 = vmul.f32 %v173, %v188
    %v198 = vmul.f32 %v174, %v193
    %vm199 = vcmask 15360
    %v200 = vsel %vm199, %v195, 0.0
    %v201 = vsel %vm199, %v196, 0.0
    %v202 = vadd.f32 %v200, %v201
    %v203 = vsel %vm199, %v197, 0.0
    %v204 = vadd.f32 %v202, %v203
    %v205 = vsel %vm199, %v198, 0.0
    %v206 = vadd.f32 %v204, %v205
    %v207 = vrot.slane %v206, 4
    %v208 = vadd.f32 %v206, %v207
    %v209 = vrot.slane %v208, 2
    %v210 = vadd.f32 %v208, %v209
    %v211 = vrot.slane %v210, 1
    %v212 = vadd.f32 %v210, %v211
    %s213 = scalar_lea.vmem %s0, 32
    %v214 = vld [vmem:[%s213] sm:$0xff]
    %v215 = vld [vmem:[%s213 + $0x8] sm:$0xff]
    %v216 = vmul.f32 %v46, %v214
    %v217 = vmul.f32 %v47, %v215
    %218 = vmatprep.subr.mxu0 0.0
    %219 = vmatpush1.msra.mxu0 %v216
    %220 = vmatprep.subr.mxu0 0.0
    %221 = vmatpush1.msra.mxu0 %v217
    %222 = vmatprep.subr.mxu0 0.0
    %223 = vmatpush1.msra.mxu0 0.0
    %224 = vmatprep.subr.mxu0 0.0
    %225 = vmatpush1.msra.mxu0 0.0
    %226 = vmatprep.subr.mxu0 0.0
    %227 = vmatpush1.msra.mxu0 0.0
    %228 = vmatprep.subr.mxu0 0.0
    %229 = vmatpush1.msra.mxu0 0.0
    %230 = vmatprep.subr.mxu0 0.0
    %231 = vmatpush1.msra.mxu0 0.0
    %232 = vmatprep.subr.mxu0 0.0
    %233 = vmatpush1.msra.mxu0 0.0
    %234 = vmatprep.subr.mxu0 0.0
    %235 = vmatpush1.msra.mxu0 0.0
    %236 = vmatprep.subr.mxu0 0.0
    %237 = vmatpush1.msra.mxu0 0.0
    %238 = vmatprep.subr.mxu0 0.0
    %239 = vmatpush1.msra.mxu0 0.0
    %240 = vmatprep.subr.mxu0 0.0
    %241 = vmatpush1.msra.mxu0 0.0
    %242 = vmatprep.subr.mxu0 0.0
    %243 = vmatpush1.msra.mxu0 0.0
    %244 = vmatprep.subr.mxu0 0.0
    %245 = vmatpush1.msra.mxu0 0.0
    %246 = vmatprep.subr.mxu0 0.0
    %247 = vmatpush1.msra.mxu0 0.0
    %248 = vmatprep.subr.mxu0 0.0
    %249 = vmatpush1.msra.mxu0 0.0
    %250 = vmatprep.subr.mxu0 0.0
    %251 = vmatpush1.msra.mxu0 0.0
    %252 = vmatprep.subr.mxu0 0.0
    %253 = vmatpush1.msra.mxu0 0.0
    %254 = vmatprep.subr.mxu0 0.0
    %255 = vmatpush1.msra.mxu0 0.0
    %256 = vmatprep.subr.mxu0 0.0
    %257 = vmatpush1.msra.mxu0 0.0
    %258 = vmatprep.subr.mxu0 0.0
    %259 = vmatpush1.msra.mxu0 0.0
    %260 = vmatprep.subr.mxu0 0.0
    %261 = vmatpush1.msra.mxu0 0.0
    %262 = vmatprep.subr.mxu0 0.0
    %263 = vmatpush1.msra.mxu0 0.0
    %264 = vmatprep.subr.mxu0 0.0
    %265 = vmatpush1.msra.mxu0 0.0
    %266 = vmatprep.subr.mxu0 0.0
    %267 = vmatpush1.msra.mxu0 0.0
    %268 = vmatprep.subr.mxu0 0.0
    %269 = vmatpush1.msra.mxu0 0.0
    %270 = vmatprep.subr.mxu0 0.0
    %271 = vmatpush1.msra.mxu0 0.0
    %272 = vmatprep.subr.mxu0 0.0
    %273 = vmatpush1.msra.mxu0 0.0
    %274 = vmatprep.subr.mxu0 0.0
    %275 = vmatpush1.msra.mxu0 0.0
    %276 = vmatprep.subr.mxu0 0.0
    %277 = vmatpush1.msra.mxu0 0.0
    %278 = vmatprep.subr.mxu0 0.0
    %279 = vmatpush1.msra.mxu0 0.0
    %280 = vmatprep.subr.mxu0 0.0
    %281 = vmatpush1.msra.mxu0 0.0
    %282 = vmatprep.mubr.f32.mxu0 0.0
    %283 = vmatmul.mubr.f32.gmra.mrb[0].mxu0 %v75
    %v284 = vpop.f32.mrb[0].mxu0
    %v285 = vadd.f32 %v56, %v284
    %v286 = vpop.f32.mrb[0].mxu0
    %287 = vmatprep.mubr.f32.mxu0 0.0
    %288 = vmatmul.mubr.f32.gmra.mrb[0].mxu0 %v78
    %v289 = vpop.f32.mrb[0].mxu0
    %v290 = vadd.f32 %v61, %v289
    %v291 = vpop.f32.mrb[0].mxu0
    %292 = vmatprep.mubr.f32.mxu0 0.0
    %293 = vmatmul.mubr.f32.gmra.mrb[0].mxu0 %v81
    %v294 = vpop.f32.mrb[0].mxu0
    %v295 = vadd.f32 %v66, %v294
    %v296 = vpop.f32.mrb[0].mxu0
    %297 = vmatprep.mubr.f32.mxu0 0.0
    %298 = vmatmul.mubr.f32.gmra.mrb[0].mxu0 %v84
    %v299 = vpop.f32.mrb[0].mxu0
    %v300 = vadd.f32 %v71, %v299
    %v301 = vpop.f32.mrb[0].mxu0
    %302 = vdwg.mxu0
    %v303 = vmax.f32 %v285, 0.0
    %v304 = vmax.f32 %v290, 0.0
    %v305 = vmax.f32 %v295, 0.0
    %v306 = vmax.f32 %v300, 0.0
    %v307 = vmul.f32 %v303, %v178
    %v308 = vmul.f32 %v304, %v183
    %v309 = vmul.f32 %v305, %v188
    %v310 = vmul.f32 %v306, %v193
    %v311 = vsel %vm199, %v307, 0.0
    %v312 = vsel %vm199, %v308, 0.0
    %v313 = vadd.f32 %v311, %v312
    %v314 = vsel %vm199, %v309, 0.0
    %v315 = vadd.f32 %v313, %v314
    %v316 = vsel %vm199, %v310, 0.0
    %v317 = vadd.f32 %v315, %v316
    %v318 = vrot.slane %v317, 4
    %v319 = vadd.f32 %v317, %v318
    %v320 = vrot.slane %v319, 2
    %v321 = vadd.f32 %v319, %v320
    %v322 = vrot.slane %v321, 1
    %v323 = vadd.f32 %v321, %v322
    %s324 = scalar_lea.vmem %s0, 48
    %v325 = vld [vmem:[%s324] sm:$0xff]
    %v326 = vld [vmem:[%s324 + $0x8] sm:$0xff]
    %v327 = vmul.f32 %v46, %v325
    %v328 = vmul.f32 %v47, %v326
    %329 = vmatprep.subr.mxu0 0.0
    %330 = vmatpush1.msra.mxu0 %v327
    %331 = vmatprep.subr.mxu0 0.0
    %332 = vmatpush1.msra.mxu0 %v328
    %333 = vmatprep.subr.mxu0 0.0
    %334 = vmatpush1.msra.mxu0 0.0
    %335 = vmatprep.subr.mxu0 0.0
    %336 = vmatpush1.msra.mxu0 0.0
    %337 = vmatprep.subr.mxu0 0.0
    %338 = vmatpush1.msra.mxu0 0.0
    %339 = vmatprep.subr.mxu0 0.0
    %340 = vmatpush1.msra.mxu0 0.0
    %341 = vmatprep.subr.mxu0 0.0
    %342 = vmatpush1.msra.mxu0 0.0
    %343 = vmatprep.subr.mxu0 0.0
    %344 = vmatpush1.msra.mxu0 0.0
    %345 = vmatprep.subr.mxu0 0.0
    %346 = vmatpush1.msra.mxu0 0.0
    %347 = vmatprep.subr.mxu0 0.0
    %348 = vmatpush1.msra.mxu0 0.0
    %349 = vmatprep.subr.mxu0 0.0
    %350 = vmatpush1.msra.mxu0 0.0
    %351 = vmatprep.subr.mxu0 0.0
    %352 = vmatpush1.msra.mxu0 0.0
    %353 = vmatprep.subr.mxu0 0.0
    %354 = vmatpush1.msra.mxu0 0.0
    %355 = vmatprep.subr.mxu0 0.0
    %356 = vmatpush1.msra.mxu0 0.0
    %357 = vmatprep.subr.mxu0 0.0
    %358 = vmatpush1.msra.mxu0 0.0
    %359 = vmatprep.subr.mxu0 0.0
    %360 = vmatpush1.msra.mxu0 0.0
    %361 = vmatprep.subr.mxu0 0.0
    %362 = vmatpush1.msra.mxu0 0.0
    %363 = vmatprep.subr.mxu0 0.0
    %364 = vmatpush1.msra.mxu0 0.0
    %365 = vmatprep.subr.mxu0 0.0
    %366 = vmatpush1.msra.mxu0 0.0
    %367 = vmatprep.subr.mxu0 0.0
    %368 = vmatpush1.msra.mxu0 0.0
    %369 = vmatprep.subr.mxu0 0.0
    %370 = vmatpush1.msra.mxu0 0.0
    %371 = vmatprep.subr.mxu0 0.0
    %372 = vmatpush1.msra.mxu0 0.0
    %373 = vmatprep.subr.mxu0 0.0
    %374 = vmatpush1.msra.mxu0 0.0
    %375 = vmatprep.subr.mxu0 0.0
    %376 = vmatpush1.msra.mxu0 0.0
    %377 = vmatprep.subr.mxu0 0.0
    %378 = vmatpush1.msra.mxu0 0.0
    %379 = vmatprep.subr.mxu0 0.0
    %380 = vmatpush1.msra.mxu0 0.0
    %381 = vmatprep.subr.mxu0 0.0
    %382 = vmatpush1.msra.mxu0 0.0
    %383 = vmatprep.subr.mxu0 0.0
    %384 = vmatpush1.msra.mxu0 0.0
    %385 = vmatprep.subr.mxu0 0.0
    %386 = vmatpush1.msra.mxu0 0.0
    %387 = vmatprep.subr.mxu0 0.0
    %388 = vmatpush1.msra.mxu0 0.0
    %389 = vmatprep.subr.mxu0 0.0
    %390 = vmatpush1.msra.mxu0 0.0
    %391 = vmatprep.subr.mxu0 0.0
    %392 = vmatpush1.msra.mxu0 0.0
    %393 = vmatprep.mubr.f32.mxu0 0.0
    %394 = vmatmul.mubr.f32.gmra.mrb[0].mxu0 %v75
    %v395 = vpop.f32.mrb[0].mxu0
    %v396 = vadd.f32 %v56, %v395
    %v397 = vpop.f32.mrb[0].mxu0
    %398 = vmatprep.mubr.f32.mxu0 0.0
    %399 = vmatmul.mubr.f32.gmra.mrb[0].mxu0 %v78
    %v400 = vpop.f32.mrb[0].mxu0
    %v401 = vadd.f32 %v61, %v400
    %v402 = vpop.f32.mrb[0].mxu0
    %403 = vmatprep.mubr.f32.mxu0 0.0
    %404 = vmatmul.mubr.f32.gmra.mrb[0].mxu0 %v81
    %v405 = vpop.f32.mrb[0].mxu0
    %v406 = vadd.f32 %v66, %v405
    %v407 = vpop.f32.mrb[0].mxu0
    %408 = vmatprep.mubr.f32.mxu0 0.0
    %409 = vmatmul.mubr.f32.gmra.mrb[0].mxu0 %v84
    %v410 = vpop.f32.mrb[0].mxu0
    %v411 = vadd.f32 %v71, %v410
    %v412 = vpop.f32.mrb[0].mxu0
    %413 = vdwg.mxu0
    %v414 = vmax.f32 %v396, 0.0
    %v415 = vmax.f32 %v401, 0.0
    %v416 = vmax.f32 %v406, 0.0
    %v417 = vmax.f32 %v411, 0.0
    %v418 = vmul.f32 %v414, %v178
    %v419 = vmul.f32 %v415, %v183
    %v420 = vmul.f32 %v416, %v188
    %v421 = vmul.f32 %v417, %v193
    %v422 = vsel %vm199, %v418, 0.0
    %v423 = vsel %vm199, %v419, 0.0
    %v424 = vadd.f32 %v422, %v423
    %v425 = vsel %vm199, %v420, 0.0
    %v426 = vadd.f32 %v424, %v425
    %v427 = vsel %vm199, %v421, 0.0
    %v428 = vadd.f32 %v426, %v427
    %v429 = vrot.slane %v428, 4
    %v430 = vadd.f32 %v428, %v429
    %v431 = vrot.slane %v430, 2
    %v432 = vadd.f32 %v430, %v431
    %v433 = vrot.slane %v432, 1
    %v434 = vadd.f32 %v432, %v433
    %v435 = vmul.f32 %v49, %v214
    %v436 = vmul.f32 %v50, %v215
    %437 = vmatprep.subr.mxu0 0.0
    %438 = vmatpush1.msra.mxu0 %v435
    %439 = vmatprep.subr.mxu0 0.0
    %440 = vmatpush1.msra.mxu0 %v436
    %441 = vmatprep.subr.mxu0 0.0
    %442 = vmatpush1.msra.mxu0 0.0
    %443 = vmatprep.subr.mxu0 0.0
    %444 = vmatpush1.msra.mxu0 0.0
    %445 = vmatprep.subr.mxu0 0.0
    %446 = vmatpush1.msra.mxu0 0.0
    %447 = vmatprep.subr.mxu0 0.0
    %448 = vmatpush1.msra.mxu0 0.0
    %449 = vmatprep.subr.mxu0 0.0
    %450 = vmatpush1.msra.mxu0 0.0
    %451 = vmatprep.subr.mxu0 0.0
    %452 = vmatpush1.msra.mxu0 0.0
    %453 = vmatprep.subr.mxu0 0.0
    %454 = vmatpush1.msra.mxu0 0.0
    %455 = vmatprep.subr.mxu0 0.0
    %456 = vmatpush1.msra.mxu0 0.0
    %457 = vmatprep.subr.mxu0 0.0
    %458 = vmatpush1.msra.mxu0 0.0
    %459 = vmatprep.subr.mxu0 0.0
    %460 = vmatpush1.msra.mxu0 0.0
    %461 = vmatprep.subr.mxu0 0.0
    %462 = vmatpush1.msra.mxu0 0.0
    %463 = vmatprep.subr.mxu0 0.0
    %464 = vmatpush1.msra.mxu0 0.0
    %465 = vmatprep.subr.mxu0 0.0
    %466 = vmatpush1.msra.mxu0 0.0
    %467 = vmatprep.subr.mxu0 0.0
    %468 = vmatpush1.msra.mxu0 0.0
    %469 = vmatprep.subr.mxu0 0.0
    %470 = vmatpush1.msra.mxu0 0.0
    %471 = vmatprep.subr.mxu0 0.0
    %472 = vmatpush1.msra.mxu0 0.0
    %473 = vmatprep.subr.mxu0 0.0
    %474 = vmatpush1.msra.mxu0 0.0
    %475 = vmatprep.subr.mxu0 0.0
    %476 = vmatpush1.msra.mxu0 0.0
    %477 = vmatprep.subr.mxu0 0.0
    %478 = vmatpush1.msra.mxu0 0.0
    %479 = vmatprep.subr.mxu0 0.0
    %480 = vmatpush1.msra.mxu0 0.0
    %481 = vmatprep.subr.mxu0 0.0
    %482 = vmatpush1.msra.mxu0 0.0
    %483 = vmatprep.subr.mxu0 0.0
    %484 = vmatpush1.msra.mxu0 0.0
    %485 = vmatprep.subr.mxu0 0.0
    %486 = vmatpush1.msra.mxu0 0.0
    %487 = vmatprep.subr.mxu0 0.0
    %488 = vmatpush1.msra.mxu0 0.0
    %489 = vmatprep.subr.mxu0 0.0
    %490 = vmatpush1.msra.mxu0 0.0
    %491 = vmatprep.subr.mxu0 0.0
    %492 = vmatpush1.msra.mxu0 0.0
    %493 = vmatprep.subr.mxu0 0.0
    %494 = vmatpush1.msra.mxu0 0.0
    %495 = vmatprep.subr.mxu0 0.0
    %496 = vmatpush1.msra.mxu0 0.0
    %497 = vmatprep.subr.mxu0 0.0
    %498 = vmatpush1.msra.mxu0 0.0
    %499 = vmatprep.subr.mxu0 0.0
    %500 = vmatpush1.msra.mxu0 0.0
    %501 = vmatprep.mubr.f32.mxu0 0.0
    %502 = vmatmul.mubr.f32.gmra.mrb[0].mxu0 %v75
    %v503 = vpop.f32.mrb[0].mxu0
    %v504 = vadd.f32 %v56, %v503
    %v505 = vpop.f32.mrb[0].mxu0
    %506 = vmatprep.mubr.f32.mxu0 0.0
    %507 = vmatmul.mubr.f32.gmra.mrb[0].mxu0 %v78
    %v508 = vpop.f32.mrb[0].mxu0
    %v509 = vadd.f32 %v61, %v508
    %v510 = vpop.f32.mrb[0].mxu0
    %511 = vmatprep.mubr.f32.mxu0 0.0
    %512 = vmatmul.mubr.f32.gmra.mrb[0].mxu0 %v81
    %v513 = vpop.f32.mrb[0].mxu0
    %v514 = vadd.f32 %v66, %v513
    %v515 = vpop.f32.mrb[0].mxu0
    %516 = vmatprep.mubr.f32.mxu0 0.0
    %517 = vmatmul.mubr.f32.gmra.mrb[0].mxu0 %v84
    %v518 = vpop.f32.mrb[0].mxu0
    %v519 = vadd.f32 %v71, %v518
    %v520 = vpop.f32.mrb[0].mxu0
    %521 = vdwg.mxu0
    %v522 = vmax.f32 %v504, 0.0
    %v523 = vmax.f32 %v509, 0.0
    %v524 = vmax.f32 %v514, 0.0
    %v525 = vmax.f32 %v519, 0.0
    %v526 = vmul.f32 %v522, %v178
    %v527 = vmul.f32 %v523, %v183
    %v528 = vmul.f32 %v524, %v188
    %v529 = vmul.f32 %v525, %v193
    %v530 = vsel %vm199, %v526, 0.0
    %v531 = vsel %vm199, %v527, 0.0
    %v532 = vadd.f32 %v530, %v531
    %v533 = vsel %vm199, %v528, 0.0
    %v534 = vadd.f32 %v532, %v533
    %v535 = vsel %vm199, %v529, 0.0
    %v536 = vadd.f32 %v534, %v535
    %v537 = vrot.slane %v536, 4
    %v538 = vadd.f32 %v536, %v537
    %v539 = vrot.slane %v538, 2
    %v540 = vadd.f32 %v538, %v539
    %v541 = vrot.slane %v540, 1
    %v542 = vadd.f32 %v540, %v541
    %v543 = vmul.f32 %v49, %v325
    %v544 = vmul.f32 %v50, %v326
    %545 = vmatprep.subr.mxu0 0.0
    %546 = vmatpush1.msra.mxu0 %v543
    %547 = vmatprep.subr.mxu0 0.0
    %548 = vmatpush1.msra.mxu0 %v544
    %549 = vmatprep.subr.mxu0 0.0
    %550 = vmatpush1.msra.mxu0 0.0
    %551 = vmatprep.subr.mxu0 0.0
    %552 = vmatpush1.msra.mxu0 0.0
    %553 = vmatprep.subr.mxu0 0.0
    %554 = vmatpush1.msra.mxu0 0.0
    %555 = vmatprep.subr.mxu0 0.0
    %556 = vmatpush1.msra.mxu0 0.0
    %557 = vmatprep.subr.mxu0 0.0
    %558 = vmatpush1.msra.mxu0 0.0
    %559 = vmatprep.subr.mxu0 0.0
    %560 = vmatpush1.msra.mxu0 0.0
    %561 = vmatprep.subr.mxu0 0.0
    %562 = vmatpush1.msra.mxu0 0.0
    %563 = vmatprep.subr.mxu0 0.0
    %564 = vmatpush1.msra.mxu0 0.0
    %565 = vmatprep.subr.mxu0 0.0
    %566 = vmatpush1.msra.mxu0 0.0
    %567 = vmatprep.subr.mxu0 0.0
    %568 = vmatpush1.msra.mxu0 0.0
    %569 = vmatprep.subr.mxu0 0.0
    %570 = vmatpush1.msra.mxu0 0.0
    %571 = vmatprep.subr.mxu0 0.0
    %572 = vmatpush1.msra.mxu0 0.0
    %573 = vmatprep.subr.mxu0 0.0
    %574 = vmatpush1.msra.mxu0 0.0
    %575 = vmatprep.subr.mxu0 0.0
    %576 = vmatpush1.msra.mxu0 0.0
    %577 = vmatprep.subr.mxu0 0.0
    %578 = vmatpush1.msra.mxu0 0.0
    %579 = vmatprep.subr.mxu0 0.0
    %580 = vmatpush1.msra.mxu0 0.0
    %581 = vmatprep.subr.mxu0 0.0
    %582 = vmatpush1.msra.mxu0 0.0
    %583 = vmatprep.subr.mxu0 0.0
    %584 = vmatpush1.msra.mxu0 0.0
    %585 = vmatprep.subr.mxu0 0.0
    %586 = vmatpush1.msra.mxu0 0.0
    %587 = vmatprep.subr.mxu0 0.0
    %588 = vmatpush1.msra.mxu0 0.0
    %589 = vmatprep.subr.mxu0 0.0
    %590 = vmatpush1.msra.mxu0 0.0
    %591 = vmatprep.subr.mxu0 0.0
    %592 = vmatpush1.msra.mxu0 0.0
    %593 = vmatprep.subr.mxu0 0.0
    %594 = vmatpush1.msra.mxu0 0.0
    %595 = vmatprep.subr.mxu0 0.0
    %596 = vmatpush1.msra.mxu0 0.0
    %597 = vmatprep.subr.mxu0 0.0
    %598 = vmatpush1.msra.mxu0 0.0
    %599 = vmatprep.subr.mxu0 0.0
    %600 = vmatpush1.msra.mxu0 0.0
    %601 = vmatprep.subr.mxu0 0.0
    %602 = vmatpush1.msra.mxu0 0.0
    %603 = vmatprep.subr.mxu0 0.0
    %604 = vmatpush1.msra.mxu0 0.0
    %605 = vmatprep.subr.mxu0 0.0
    %606 = vmatpush1.msra.mxu0 0.0
    %607 = vmatprep.subr.mxu0 0.0
    %608 = vmatpush1.msra.mxu0 0.0
    %609 = vmatprep.mubr.f32.mxu0 0.0
    %610 = vmatmul.mubr.f32.gmra.mrb[0].mxu0 %v75
    %v611 = vpop.f32.mrb[0].mxu0
    %v612 = vadd.f32 %v56, %v611
    %v613 = vpop.f32.mrb[0].mxu0
    %614 = vmatprep.mubr.f32.mxu0 0.0
    %615 = vmatmul.mubr.f32.gmra.mrb[0].mxu0 %v78
    %v616 = vpop.f32.mrb[0].mxu0
    %v617 = vadd.f32 %v61, %v616
    %v618 = vpop.f32.mrb[0].mxu0
    %619 = vmatprep.mubr.f32.mxu0 0.0
    %620 = vmatmul.mubr.f32.gmra.mrb[0].mxu0 %v81
    %v621 = vpop.f32.mrb[0].mxu0
    %v622 = vadd.f32 %v66, %v621
    %v623 = vpop.f32.mrb[0].mxu0
    %624 = vmatprep.mubr.f32.mxu0 0.0
    %625 = vmatmul.mubr.f32.gmra.mrb[0].mxu0 %v84
    %v626 = vpop.f32.mrb[0].mxu0
    %v627 = vadd.f32 %v71, %v626
    %v628 = vpop.f32.mrb[0].mxu0
    %629 = vdwg.mxu0
    %v630 = vmax.f32 %v612, 0.0
    %v631 = vmax.f32 %v617, 0.0
    %v632 = vmax.f32 %v622, 0.0
    %v633 = vmax.f32 %v627, 0.0
    %v634 = vmul.f32 %v630, %v178
    %v635 = vmul.f32 %v631, %v183
    %v636 = vmul.f32 %v632, %v188
    %v637 = vmul.f32 %v633, %v193
    %v638 = vsel %vm199, %v634, 0.0
    %v639 = vsel %vm199, %v635, 0.0
    %v640 = vadd.f32 %v638, %v639
    %v641 = vsel %vm199, %v636, 0.0
    %v642 = vadd.f32 %v640, %v641
    %v643 = vsel %vm199, %v637, 0.0
    %v644 = vadd.f32 %v642, %v643
    %v645 = vrot.slane %v644, 4
    %v646 = vadd.f32 %v644, %v645
    %v647 = vrot.slane %v646, 2
    %v648 = vadd.f32 %v646, %v647
    %v649 = vrot.slane %v648, 1
    %v650 = vadd.f32 %v648, %v649
    %v651 = vmul.f32 %v214, %v325
    %v652 = vmul.f32 %v215, %v326
    %653 = vmatprep.subr.mxu0 0.0
    %654 = vmatpush1.msra.mxu0 %v651
    %655 = vmatprep.subr.mxu0 0.0
    %656 = vmatpush1.msra.mxu0 %v652
    %657 = vmatprep.subr.mxu0 0.0
    %658 = vmatpush1.msra.mxu0 0.0
    %659 = vmatprep.subr.mxu0 0.0
    %660 = vmatpush1.msra.mxu0 0.0
    %661 = vmatprep.subr.mxu0 0.0
    %662 = vmatpush1.msra.mxu0 0.0
    %663 = vmatprep.subr.mxu0 0.0
    %664 = vmatpush1.msra.mxu0 0.0
    %665 = vmatprep.subr.mxu0 0.0
    %666 = vmatpush1.msra.mxu0 0.0
    %667 = vmatprep.subr.mxu0 0.0
    %668 = vmatpush1.msra.mxu0 0.0
    %669 = vmatprep.subr.mxu0 0.0
    %670 = vmatpush1.msra.mxu0 0.0
    %671 = vmatprep.subr.mxu0 0.0
    %672 = vmatpush1.msra.mxu0 0.0
    %673 = vmatprep.subr.mxu0 0.0
    %674 = vmatpush1.msra.mxu0 0.0
    %675 = vmatprep.subr.mxu0 0.0
    %676 = vmatpush1.msra.mxu0 0.0
    %677 = vmatprep.subr.mxu0 0.0
    %678 = vmatpush1.msra.mxu0 0.0
    %679 = vmatprep.subr.mxu0 0.0
    %680 = vmatpush1.msra.mxu0 0.0
    %681 = vmatprep.subr.mxu0 0.0
    %682 = vmatpush1.msra.mxu0 0.0
    %683 = vmatprep.subr.mxu0 0.0
    %684 = vmatpush1.msra.mxu0 0.0
    %685 = vmatprep.subr.mxu0 0.0
    %686 = vmatpush1.msra.mxu0 0.0
    %687 = vmatprep.subr.mxu0 0.0
    %688 = vmatpush1.msra.mxu0 0.0
    %689 = vmatprep.subr.mxu0 0.0
    %690 = vmatpush1.msra.mxu0 0.0
    %691 = vmatprep.subr.mxu0 0.0
    %692 = vmatpush1.msra.mxu0 0.0
    %693 = vmatprep.subr.mxu0 0.0
    %694 = vmatpush1.msra.mxu0 0.0
    %695 = vmatprep.subr.mxu0 0.0
    %696 = vmatpush1.msra.mxu0 0.0
    %697 = vmatprep.subr.mxu0 0.0
    %698 = vmatpush1.msra.mxu0 0.0
    %699 = vmatprep.subr.mxu0 0.0
    %700 = vmatpush1.msra.mxu0 0.0
    %701 = vmatprep.subr.mxu0 0.0
    %702 = vmatpush1.msra.mxu0 0.0
    %703 = vmatprep.subr.mxu0 0.0
    %704 = vmatpush1.msra.mxu0 0.0
    %705 = vmatprep.subr.mxu0 0.0
    %706 = vmatpush1.msra.mxu0 0.0
    %707 = vmatprep.subr.mxu0 0.0
    %708 = vmatpush1.msra.mxu0 0.0
    %709 = vmatprep.subr.mxu0 0.0
    %710 = vmatpush1.msra.mxu0 0.0
    %711 = vmatprep.subr.mxu0 0.0
    %712 = vmatpush1.msra.mxu0 0.0
    %713 = vmatprep.subr.mxu0 0.0
    %714 = vmatpush1.msra.mxu0 0.0
    %715 = vmatprep.subr.mxu0 0.0
    %716 = vmatpush1.msra.mxu0 0.0
    %717 = vmatprep.mubr.f32.mxu0 0.0
    %718 = vmatmul.mubr.f32.gmra.mrb[0].mxu0 %v75
    %v719 = vpop.f32.mrb[0].mxu0
    %v720 = vadd.f32 %v56, %v719
    %v721 = vpop.f32.mrb[0].mxu0
    %722 = vmatprep.mubr.f32.mxu0 0.0
    %723 = vmatmul.mubr.f32.gmra.mrb[0].mxu0 %v78
    %v724 = vpop.f32.mrb[0].mxu0
    %v725 = vadd.f32 %v61, %v724
    %v726 = vpop.f32.mrb[0].mxu0
    %727 = vmatprep.mubr.f32.mxu0 0.0
    %728 = vmatmul.mubr.f32.gmra.mrb[0].mxu0 %v81
    %v729 = vpop.f32.mrb[0].mxu0
    %v730 = vadd.f32 %v66, %v729
    %v731 = vpop.f32.mrb[0].mxu0
    %732 = vmatprep.mubr.f32.mxu0 0.0
    %733 = vmatmul.mubr.f32.gmra.mrb[0].mxu0 %v84
    %v734 = vpop.f32.mrb[0].mxu0
    %v735 = vadd.f32 %v71, %v734
    %v736 = vpop.f32.mrb[0].mxu0
    %737 = vdwg.mxu0
    %v738 = vmax.f32 %v720, 0.0
    %v739 = vmax.f32 %v725, 0.0
    %v740 = vmax.f32 %v730, 0.0
    %v741 = vmax.f32 %v735, 0.0
    %v742 = vmul.f32 %v738, %v178
    %v743 = vmul.f32 %v739, %v183
    %v744 = vmul.f32 %v740, %v188
    %v745 = vmul.f32 %v741, %v193
    %v746 = vsel %vm199, %v742, 0.0
    %v747 = vsel %vm199, %v743, 0.0
    %v748 = vadd.f32 %v746, %v747
    %v749 = vsel %vm199, %v744, 0.0
    %v750 = vadd.f32 %v748, %v749
    %v751 = vsel %vm199, %v745, 0.0
    %v752 = vadd.f32 %v750, %v751
    %v753 = vrot.slane %v752, 4
    %v754 = vadd.f32 %v752, %v753
    %v755 = vrot.slane %v754, 2
    %v756 = vadd.f32 %v754, %v755
    %v757 = vrot.slane %v756, 1
    %v758 = vadd.f32 %v756, %v757
    %v759 = vmax.f32 %v212, %v323
    %v760 = vmax.f32 %v759, %v434
    %v761 = vmax.f32 %v760, %v542
    %v762 = vmax.f32 %v761, %v650
    %v763 = vmax.f32 %v762, %v758
    %v764 = vsub.f32 %v212, %v763
    %v765 = vmul.f32 %v764, 1.442695
    %v766 = vpow.pop %v765
    %v767 = vsub.f32 %v323, %v763
    %v768 = vmul.f32 %v767, 1.442695
    %v769 = vpow.pop %v768
    %v770 = vsub.f32 %v434, %v763
    %v771 = vmul.f32 %v770, 1.442695
    %v772 = vpow.pop %v771
    %v773 = vsub.f32 %v542, %v763
    %v774 = vmul.f32 %v773, 1.442695
    %v775 = vpow.pop %v774
    %v776 = vsub.f32 %v650, %v763
    %v777 = vmul.f32 %v776, 1.442695
    %v778 = vpow.pop %v777
    %v779 = vsub.f32 %v758, %v763
    %v780 = vmul.f32 %v779, 1.442695
    %v781 = vpow.pop %v780
    %v782 = vadd.f32 %v766, %v769
    %v783 = vadd.f32 %v782, %v772
    %v784 = vadd.f32 %v783, %v775
    %v785 = vadd.f32 %v784, %v778
    %v786 = vadd.f32 %v785, %v781
    %v787 = vrcp.pop %v786
    %v788 = vmul.f32 %v766, %v787
    %v789 = vmul.f32 %v788, %v51
    %v790 = vmul.f32 %v788, %v52
    %v791 = vmul.f32 %v769, %v787
    %v792 = vmul.f32 %v791, %v216
    %v793 = vmul.f32 %v791, %v217
    %v794 = vadd.f32 %v789, %v792
    %v795 = vadd.f32 %v790, %v793
    %v796 = vmul.f32 %v772, %v787
    %v797 = vmul.f32 %v796, %v327
    %v798 = vmul.f32 %v796, %v328
    %v799 = vadd.f32 %v794, %v797
    %v800 = vadd.f32 %v795, %v798
    %v801 = vmul.f32 %v775, %v787
    %v802 = vmul.f32 %v801, %v435
    %v803 = vmul.f32 %v801, %v436
    %v804 = vadd.f32 %v799, %v802
    %v805 = vadd.f32 %v800, %v803
    %v806 = vmul.f32 %v778, %v787
    %v807 = vmul.f32 %v806, %v543
    %v808 = vmul.f32 %v806, %v544
    %v809 = vadd.f32 %v804, %v807
    %v810 = vadd.f32 %v805, %v808
    %v811 = vmul.f32 %v781, %v787
    %v812 = vmul.f32 %v811, %v651
    %v813 = vmul.f32 %v811, %v652
    %v814 = vadd.f32 %v809, %v812
    %v815 = vadd.f32 %v810, %v813
    %v816 = vadd.f32 %v814, 1.0
    %v817 = vadd.f32 %v815, 1.0
    %s818 = scalar_lea.vmem %s1, 32
    %v819 = vld [vmem:[%s818] sm:$0xff]
    %v820 = vld [vmem:[%s818 + $0x8] sm:$0xff]
    %v821 = vld [vmem:[%s818 + $0x10] sm:$0xff]
    %v822 = vld [vmem:[%s818 + $0x18] sm:$0xff]
    %s823 = scalar_lea.vmem %s2, 32
    %v824 = vld [vmem:[%s823] sm:$0xff]
    %v825 = vld [vmem:[%s823 + $0x8] sm:$0xff]
    %v826 = vld [vmem:[%s823 + $0x10] sm:$0xff]
    %v827 = vld [vmem:[%s823 + $0x18] sm:$0xff]
    %s828 = scalar_lea.vmem %s3, 32
    %v829 = vld [vmem:[%s828] sm:$0xff]
    %v830 = vld [vmem:[%s828 + $0x8] sm:$0xff]
    %v831 = vld [vmem:[%s828 + $0x10] sm:$0xff]
    %v832 = vld [vmem:[%s828 + $0x18] sm:$0xff]
    %v833 = vmul.f32 %v46, %v46
    %v834 = vmul.f32 %v47, %v47
    %v835 = vmul.f32 %v833, %v816
    %v836 = vmul.f32 %v834, %v817
    %838 = vset.pattern.permute.xlu0 0
    %839 = vperm.xlu0 %838, %v824
    %v840 = vpop.permute.xlu0 %839
    %843 = vset.pattern.permute.xlu0 0
    %844 = vperm.xlu0 %843, %v825
    %v845 = vpop.permute.xlu0 %844
    %848 = vset.pattern.permute.xlu0 0
    %849 = vperm.xlu0 %848, %v826
    %v850 = vpop.permute.xlu0 %849
    %853 = vset.pattern.permute.xlu0 0
    %854 = vperm.xlu0 %853, %v827
    %v855 = vpop.permute.xlu0 %854
    %v858 = vsel %vm73, %v819, 0
    %v861 = vsel %vm73, %v820, 0
    %v864 = vsel %vm73, %v821, 0
    %v867 = vsel %vm73, %v822, 0
    %869 = vmatprep.subr.mxu0 0.0
    %870 = vmatpush1.msra.mxu0 %v835
    %871 = vmatprep.subr.mxu0 0.0
    %872 = vmatpush1.msra.mxu0 %v836
    %873 = vmatprep.subr.mxu0 0.0
    %874 = vmatpush1.msra.mxu0 0.0
    %875 = vmatprep.subr.mxu0 0.0
    %876 = vmatpush1.msra.mxu0 0.0
    %877 = vmatprep.subr.mxu0 0.0
    %878 = vmatpush1.msra.mxu0 0.0
    %879 = vmatprep.subr.mxu0 0.0
    %880 = vmatpush1.msra.mxu0 0.0
    %881 = vmatprep.subr.mxu0 0.0
    %882 = vmatpush1.msra.mxu0 0.0
    %883 = vmatprep.subr.mxu0 0.0
    %884 = vmatpush1.msra.mxu0 0.0
    %885 = vmatprep.subr.mxu0 0.0
    %886 = vmatpush1.msra.mxu0 0.0
    %887 = vmatprep.subr.mxu0 0.0
    %888 = vmatpush1.msra.mxu0 0.0
    %889 = vmatprep.subr.mxu0 0.0
    %890 = vmatpush1.msra.mxu0 0.0
    %891 = vmatprep.subr.mxu0 0.0
    %892 = vmatpush1.msra.mxu0 0.0
    %893 = vmatprep.subr.mxu0 0.0
    %894 = vmatpush1.msra.mxu0 0.0
    %895 = vmatprep.subr.mxu0 0.0
    %896 = vmatpush1.msra.mxu0 0.0
    %897 = vmatprep.subr.mxu0 0.0
    %898 = vmatpush1.msra.mxu0 0.0
    %899 = vmatprep.subr.mxu0 0.0
    %900 = vmatpush1.msra.mxu0 0.0
    %901 = vmatprep.subr.mxu0 0.0
    %902 = vmatpush1.msra.mxu0 0.0
    %903 = vmatprep.subr.mxu0 0.0
    %904 = vmatpush1.msra.mxu0 0.0
    %905 = vmatprep.subr.mxu0 0.0
    %906 = vmatpush1.msra.mxu0 0.0
    %907 = vmatprep.subr.mxu0 0.0
    %908 = vmatpush1.msra.mxu0 0.0
    %909 = vmatprep.subr.mxu0 0.0
    %910 = vmatpush1.msra.mxu0 0.0
    %911 = vmatprep.subr.mxu0 0.0
    %912 = vmatpush1.msra.mxu0 0.0
    %913 = vmatprep.subr.mxu0 0.0
    %914 = vmatpush1.msra.mxu0 0.0
    %915 = vmatprep.subr.mxu0 0.0
    %916 = vmatpush1.msra.mxu0 0.0
    %917 = vmatprep.subr.mxu0 0.0
    %918 = vmatpush1.msra.mxu0 0.0
    %919 = vmatprep.subr.mxu0 0.0
    %920 = vmatpush1.msra.mxu0 0.0
    %921 = vmatprep.subr.mxu0 0.0
    %922 = vmatpush1.msra.mxu0 0.0
    %923 = vmatprep.subr.mxu0 0.0
    %924 = vmatpush1.msra.mxu0 0.0
    %925 = vmatprep.subr.mxu0 0.0
    %926 = vmatpush1.msra.mxu0 0.0
    %927 = vmatprep.subr.mxu0 0.0
    %928 = vmatpush1.msra.mxu0 0.0
    %929 = vmatprep.subr.mxu0 0.0
    %930 = vmatpush1.msra.mxu0 0.0
    %931 = vmatprep.subr.mxu0 0.0
    %932 = vmatpush1.msra.mxu0 0.0
    %933 = vmatprep.mubr.f32.mxu0 0.0
    %934 = vmatmul.mubr.f32.gmra.mrb[0].mxu0 %v858
    %v935 = vpop.f32.mrb[0].mxu0
    %v936 = vadd.f32 %v840, %v935
    %v937 = vpop.f32.mrb[0].mxu0
    %938 = vmatprep.mubr.f32.mxu0 0.0
    %939 = vmatmul.mubr.f32.gmra.mrb[0].mxu0 %v861
    %v940 = vpop.f32.mrb[0].mxu0
    %v941 = vadd.f32 %v845, %v940
    %v942 = vpop.f32.mrb[0].mxu0
    %943 = vmatprep.mubr.f32.mxu0 0.0
    %944 = vmatmul.mubr.f32.gmra.mrb[0].mxu0 %v864
    %v945 = vpop.f32.mrb[0].mxu0
    %v946 = vadd.f32 %v850, %v945
    %v947 = vpop.f32.mrb[0].mxu0
    %948 = vmatprep.mubr.f32.mxu0 0.0
    %949 = vmatmul.mubr.f32.gmra.mrb[0].mxu0 %v867
    %v950 = vpop.f32.mrb[0].mxu0
    %v951 = vadd.f32 %v855, %v950
    %v952 = vpop.f32.mrb[0].mxu0
    %953 = vdwg.mxu0
    %v954 = vmax.f32 %v936, 0.0
    %v955 = vmax.f32 %v941, 0.0
    %v956 = vmax.f32 %v946, 0.0
    %v957 = vmax.f32 %v951, 0.0
    %959 = vset.pattern.permute.xlu0 0
    %960 = vperm.xlu0 %959, %v829
    %v961 = vpop.permute.xlu0 %960
    %964 = vset.pattern.permute.xlu0 0
    %965 = vperm.xlu0 %964, %v830
    %v966 = vpop.permute.xlu0 %965
    %969 = vset.pattern.permute.xlu0 0
    %970 = vperm.xlu0 %969, %v831
    %v971 = vpop.permute.xlu0 %970
    %974 = vset.pattern.permute.xlu0 0
    %975 = vperm.xlu0 %974, %v832
    %v976 = vpop.permute.xlu0 %975
    %v978 = vmul.f32 %v954, %v961
    %v979 = vmul.f32 %v955, %v966
    %v980 = vmul.f32 %v956, %v971
    %v981 = vmul.f32 %v957, %v976
    %v982 = vsel %vm199, %v978, 0.0
    %v983 = vsel %vm199, %v979, 0.0
    %v984 = vadd.f32 %v982, %v983
    %v985 = vsel %vm199, %v980, 0.0
    %v986 = vadd.f32 %v984, %v985
    %v987 = vsel %vm199, %v981, 0.0
    %v988 = vadd.f32 %v986, %v987
    %v989 = vrot.slane %v988, 4
    %v990 = vadd.f32 %v988, %v989
    %v991 = vrot.slane %v990, 2
    %v992 = vadd.f32 %v990, %v991
    %v993 = vrot.slane %v992, 1
    %v994 = vadd.f32 %v992, %v993
    %v995 = vmul.f32 %v49, %v49
    %v996 = vmul.f32 %v50, %v50
    %v997 = vmul.f32 %v995, %v816
    %v998 = vmul.f32 %v996, %v817
    %999 = vmatprep.subr.mxu0 0.0
    %1000 = vmatpush1.msra.mxu0 %v997
    %1001 = vmatprep.subr.mxu0 0.0
    %1002 = vmatpush1.msra.mxu0 %v998
    %1003 = vmatprep.subr.mxu0 0.0
    %1004 = vmatpush1.msra.mxu0 0.0
    %1005 = vmatprep.subr.mxu0 0.0
    %1006 = vmatpush1.msra.mxu0 0.0
    %1007 = vmatprep.subr.mxu0 0.0
    %1008 = vmatpush1.msra.mxu0 0.0
    %1009 = vmatprep.subr.mxu0 0.0
    %1010 = vmatpush1.msra.mxu0 0.0
    %1011 = vmatprep.subr.mxu0 0.0
    %1012 = vmatpush1.msra.mxu0 0.0
    %1013 = vmatprep.subr.mxu0 0.0
    %1014 = vmatpush1.msra.mxu0 0.0
    %1015 = vmatprep.subr.mxu0 0.0
    %1016 = vmatpush1.msra.mxu0 0.0
    %1017 = vmatprep.subr.mxu0 0.0
    %1018 = vmatpush1.msra.mxu0 0.0
    %1019 = vmatprep.subr.mxu0 0.0
    %1020 = vmatpush1.msra.mxu0 0.0
    %1021 = vmatprep.subr.mxu0 0.0
    %1022 = vmatpush1.msra.mxu0 0.0
    %1023 = vmatprep.subr.mxu0 0.0
    %1024 = vmatpush1.msra.mxu0 0.0
    %1025 = vmatprep.subr.mxu0 0.0
    %1026 = vmatpush1.msra.mxu0 0.0
    %1027 = vmatprep.subr.mxu0 0.0
    %1028 = vmatpush1.msra.mxu0 0.0
    %1029 = vmatprep.subr.mxu0 0.0
    %1030 = vmatpush1.msra.mxu0 0.0
    %1031 = vmatprep.subr.mxu0 0.0
    %1032 = vmatpush1.msra.mxu0 0.0
    %1033 = vmatprep.subr.mxu0 0.0
    %1034 = vmatpush1.msra.mxu0 0.0
    %1035 = vmatprep.subr.mxu0 0.0
    %1036 = vmatpush1.msra.mxu0 0.0
    %1037 = vmatprep.subr.mxu0 0.0
    %1038 = vmatpush1.msra.mxu0 0.0
    %1039 = vmatprep.subr.mxu0 0.0
    %1040 = vmatpush1.msra.mxu0 0.0
    %1041 = vmatprep.subr.mxu0 0.0
    %1042 = vmatpush1.msra.mxu0 0.0
    %1043 = vmatprep.subr.mxu0 0.0
    %1044 = vmatpush1.msra.mxu0 0.0
    %1045 = vmatprep.subr.mxu0 0.0
    %1046 = vmatpush1.msra.mxu0 0.0
    %1047 = vmatprep.subr.mxu0 0.0
    %1048 = vmatpush1.msra.mxu0 0.0
    %1049 = vmatprep.subr.mxu0 0.0
    %1050 = vmatpush1.msra.mxu0 0.0
    %1051 = vmatprep.subr.mxu0 0.0
    %1052 = vmatpush1.msra.mxu0 0.0
    %1053 = vmatprep.subr.mxu0 0.0
    %1054 = vmatpush1.msra.mxu0 0.0
    %1055 = vmatprep.subr.mxu0 0.0
    %1056 = vmatpush1.msra.mxu0 0.0
    %1057 = vmatprep.subr.mxu0 0.0
    %1058 = vmatpush1.msra.mxu0 0.0
    %1059 = vmatprep.subr.mxu0 0.0
    %1060 = vmatpush1.msra.mxu0 0.0
    %1061 = vmatprep.subr.mxu0 0.0
    %1062 = vmatpush1.msra.mxu0 0.0
    %1063 = vmatprep.mubr.f32.mxu0 0.0
    %1064 = vmatmul.mubr.f32.gmra.mrb[0].mxu0 %v858
    %v1065 = vpop.f32.mrb[0].mxu0
    %v1066 = vadd.f32 %v840, %v1065
    %v1067 = vpop.f32.mrb[0].mxu0
    %1068 = vmatprep.mubr.f32.mxu0 0.0
    %1069 = vmatmul.mubr.f32.gmra.mrb[0].mxu0 %v861
    %v1070 = vpop.f32.mrb[0].mxu0
    %v1071 = vadd.f32 %v845, %v1070
    %v1072 = vpop.f32.mrb[0].mxu0
    %1073 = vmatprep.mubr.f32.mxu0 0.0
    %1074 = vmatmul.mubr.f32.gmra.mrb[0].mxu0 %v864
    %v1075 = vpop.f32.mrb[0].mxu0
    %v1076 = vadd.f32 %v850, %v1075
    %v1077 = vpop.f32.mrb[0].mxu0
    %1078 = vmatprep.mubr.f32.mxu0 0.0
    %1079 = vmatmul.mubr.f32.gmra.mrb[0].mxu0 %v867
    %v1080 = vpop.f32.mrb[0].mxu0
    %v1081 = vadd.f32 %v855, %v1080
    %v1082 = vpop.f32.mrb[0].mxu0
    %1083 = vdwg.mxu0
    %v1084 = vmax.f32 %v1066, 0.0
    %v1085 = vmax.f32 %v1071, 0.0
    %v1086 = vmax.f32 %v1076, 0.0
    %v1087 = vmax.f32 %v1081, 0.0
    %v1088 = vmul.f32 %v1084, %v961
    %v1089 = vmul.f32 %v1085, %v966
    %v1090 = vmul.f32 %v1086, %v971
    %v1091 = vmul.f32 %v1087, %v976
    %v1092 = vsel %vm199, %v1088, 0.0
    %v1093 = vsel %vm199, %v1089, 0.0
    %v1094 = vadd.f32 %v1092, %v1093
    %v1095 = vsel %vm199, %v1090, 0.0
    %v1096 = vadd.f32 %v1094, %v1095
    %v1097 = vsel %vm199, %v1091, 0.0
    %v1098 = vadd.f32 %v1096, %v1097
    %v1099 = vrot.slane %v1098, 4
    %v1100 = vadd.f32 %v1098, %v1099
    %v1101 = vrot.slane %v1100, 2
    %v1102 = vadd.f32 %v1100, %v1101
    %v1103 = vrot.slane %v1102, 1
    %v1104 = vadd.f32 %v1102, %v1103
    %v1105 = vmul.f32 %v214, %v214
    %v1106 = vmul.f32 %v215, %v215
    %v1107 = vmul.f32 %v1105, %v816
    %v1108 = vmul.f32 %v1106, %v817
    %1109 = vmatprep.subr.mxu0 0.0
    %1110 = vmatpush1.msra.mxu0 %v1107
    %1111 = vmatprep.subr.mxu0 0.0
    %1112 = vmatpush1.msra.mxu0 %v1108
    %1113 = vmatprep.subr.mxu0 0.0
    %1114 = vmatpush1.msra.mxu0 0.0
    %1115 = vmatprep.subr.mxu0 0.0
    %1116 = vmatpush1.msra.mxu0 0.0
    %1117 = vmatprep.subr.mxu0 0.0
    %1118 = vmatpush1.msra.mxu0 0.0
    %1119 = vmatprep.subr.mxu0 0.0
    %1120 = vmatpush1.msra.mxu0 0.0
    %1121 = vmatprep.subr.mxu0 0.0
    %1122 = vmatpush1.msra.mxu0 0.0
    %1123 = vmatprep.subr.mxu0 0.0
    %1124 = vmatpush1.msra.mxu0 0.0
    %1125 = vmatprep.subr.mxu0 0.0
    %1126 = vmatpush1.msra.mxu0 0.0
    %1127 = vmatprep.subr.mxu0 0.0
    %1128 = vmatpush1.msra.mxu0 0.0
    %1129 = vmatprep.subr.mxu0 0.0
    %1130 = vmatpush1.msra.mxu0 0.0
    %1131 = vmatprep.subr.mxu0 0.0
    %1132 = vmatpush1.msra.mxu0 0.0
    %1133 = vmatprep.subr.mxu0 0.0
    %1134 = vmatpush1.msra.mxu0 0.0
    %1135 = vmatprep.subr.mxu0 0.0
    %1136 = vmatpush1.msra.mxu0 0.0
    %1137 = vmatprep.subr.mxu0 0.0
    %1138 = vmatpush1.msra.mxu0 0.0
    %1139 = vmatprep.subr.mxu0 0.0
    %1140 = vmatpush1.msra.mxu0 0.0
    %1141 = vmatprep.subr.mxu0 0.0
    %1142 = vmatpush1.msra.mxu0 0.0
    %1143 = vmatprep.subr.mxu0 0.0
    %1144 = vmatpush1.msra.mxu0 0.0
    %1145 = vmatprep.subr.mxu0 0.0
    %1146 = vmatpush1.msra.mxu0 0.0
    %1147 = vmatprep.subr.mxu0 0.0
    %1148 = vmatpush1.msra.mxu0 0.0
    %1149 = vmatprep.subr.mxu0 0.0
    %1150 = vmatpush1.msra.mxu0 0.0
    %1151 = vmatprep.subr.mxu0 0.0
    %1152 = vmatpush1.msra.mxu0 0.0
    %1153 = vmatprep.subr.mxu0 0.0
    %1154 = vmatpush1.msra.mxu0 0.0
    %1155 = vmatprep.subr.mxu0 0.0
    %1156 = vmatpush1.msra.mxu0 0.0
    %1157 = vmatprep.subr.mxu0 0.0
    %1158 = vmatpush1.msra.mxu0 0.0
    %1159 = vmatprep.subr.mxu0 0.0
    %1160 = vmatpush1.msra.mxu0 0.0
    %1161 = vmatprep.subr.mxu0 0.0
    %1162 = vmatpush1.msra.mxu0 0.0
    %1163 = vmatprep.subr.mxu0 0.0
    %1164 = vmatpush1.msra.mxu0 0.0
    %1165 = vmatprep.subr.mxu0 0.0
    %1166 = vmatpush1.msra.mxu0 0.0
    %1167 = vmatprep.subr.mxu0 0.0
    %1168 = vmatpush1.msra.mxu0 0.0
    %1169 = vmatprep.subr.mxu0 0.0
    %1170 = vmatpush1.msra.mxu0 0.0
    %1171 = vmatprep.subr.mxu0 0.0
    %1172 = vmatpush1.msra.mxu0 0.0
    %1173 = vmatprep.mubr.f32.mxu0 0.0
    %1174 = vmatmul.mubr.f32.gmra.mrb[0].mxu0 %v858
    %v1175 = vpop.f32.mrb[0].mxu0
    %v1176 = vadd.f32 %v840, %v1175
    %v1177 = vpop.f32.mrb[0].mxu0
    %1178 = vmatprep.mubr.f32.mxu0 0.0
    %1179 = vmatmul.mubr.f32.gmra.mrb[0].mxu0 %v861
    %v1180 = vpop.f32.mrb[0].mxu0
    %v1181 = vadd.f32 %v845, %v1180
    %v1182 = vpop.f32.mrb[0].mxu0
    %1183 = vmatprep.mubr.f32.mxu0 0.0
    %1184 = vmatmul.mubr.f32.gmra.mrb[0].mxu0 %v864
    %v1185 = vpop.f32.mrb[0].mxu0
    %v1186 = vadd.f32 %v850, %v1185
    %v1187 = vpop.f32.mrb[0].mxu0
    %1188 = vmatprep.mubr.f32.mxu0 0.0
    %1189 = vmatmul.mubr.f32.gmra.mrb[0].mxu0 %v867
    %v1190 = vpop.f32.mrb[0].mxu0
    %v1191 = vadd.f32 %v855, %v1190
    %v1192 = vpop.f32.mrb[0].mxu0
    %1193 = vdwg.mxu0
    %v1194 = vmax.f32 %v1176, 0.0
    %v1195 = vmax.f32 %v1181, 0.0
    %v1196 = vmax.f32 %v1186, 0.0
    %v1197 = vmax.f32 %v1191, 0.0
    %v1198 = vmul.f32 %v1194, %v961
    %v1199 = vmul.f32 %v1195, %v966
    %v1200 = vmul.f32 %v1196, %v971
    %v1201 = vmul.f32 %v1197, %v976
    %v1202 = vsel %vm199, %v1198, 0.0
    %v1203 = vsel %vm199, %v1199, 0.0
    %v1204 = vadd.f32 %v1202, %v1203
    %v1205 = vsel %vm199, %v1200, 0.0
    %v1206 = vadd.f32 %v1204, %v1205
    %v1207 = vsel %vm199, %v1201, 0.0
    %v1208 = vadd.f32 %v1206, %v1207
    %v1209 = vrot.slane %v1208, 4
    %v1210 = vadd.f32 %v1208, %v1209
    %v1211 = vrot.slane %v1210, 2
    %v1212 = vadd.f32 %v1210, %v1211
    %v1213 = vrot.slane %v1212, 1
    %v1214 = vadd.f32 %v1212, %v1213
    %v1215 = vmul.f32 %v325, %v325
    %v1216 = vmul.f32 %v326, %v326
    %v1217 = vmul.f32 %v1215, %v816
    %v1218 = vmul.f32 %v1216, %v817
    %1219 = vmatprep.subr.mxu0 0.0
    %1220 = vmatpush1.msra.mxu0 %v1217
    %1221 = vmatprep.subr.mxu0 0.0
    %1222 = vmatpush1.msra.mxu0 %v1218
    %1223 = vmatprep.subr.mxu0 0.0
    %1224 = vmatpush1.msra.mxu0 0.0
    %1225 = vmatprep.subr.mxu0 0.0
    %1226 = vmatpush1.msra.mxu0 0.0
    %1227 = vmatprep.subr.mxu0 0.0
    %1228 = vmatpush1.msra.mxu0 0.0
    %1229 = vmatprep.subr.mxu0 0.0
    %1230 = vmatpush1.msra.mxu0 0.0
    %1231 = vmatprep.subr.mxu0 0.0
    %1232 = vmatpush1.msra.mxu0 0.0
    %1233 = vmatprep.subr.mxu0 0.0
    %1234 = vmatpush1.msra.mxu0 0.0
    %1235 = vmatprep.subr.mxu0 0.0
    %1236 = vmatpush1.msra.mxu0 0.0
    %1237 = vmatprep.subr.mxu0 0.0
    %1238 = vmatpush1.msra.mxu0 0.0
    %1239 = vmatprep.subr.mxu0 0.0
    %1240 = vmatpush1.msra.mxu0 0.0
    %1241 = vmatprep.subr.mxu0 0.0
    %1242 = vmatpush1.msra.mxu0 0.0
    %1243 = vmatprep.subr.mxu0 0.0
    %1244 = vmatpush1.msra.mxu0 0.0
    %1245 = vmatprep.subr.mxu0 0.0
    %1246 = vmatpush1.msra.mxu0 0.0
    %1247 = vmatprep.subr.mxu0 0.0
    %1248 = vmatpush1.msra.mxu0 0.0
    %1249 = vmatprep.subr.mxu0 0.0
    %1250 = vmatpush1.msra.mxu0 0.0
    %1251 = vmatprep.subr.mxu0 0.0
    %1252 = vmatpush1.msra.mxu0 0.0
    %1253 = vmatprep.subr.mxu0 0.0
    %1254 = vmatpush1.msra.mxu0 0.0
    %1255 = vmatprep.subr.mxu0 0.0
    %1256 = vmatpush1.msra.mxu0 0.0
    %1257 = vmatprep.subr.mxu0 0.0
    %1258 = vmatpush1.msra.mxu0 0.0
    %1259 = vmatprep.subr.mxu0 0.0
    %1260 = vmatpush1.msra.mxu0 0.0
    %1261 = vmatprep.subr.mxu0 0.0
    %1262 = vmatpush1.msra.mxu0 0.0
    %1263 = vmatprep.subr.mxu0 0.0
    %1264 = vmatpush1.msra.mxu0 0.0
    %1265 = vmatprep.subr.mxu0 0.0
    %1266 = vmatpush1.msra.mxu0 0.0
    %1267 = vmatprep.subr.mxu0 0.0
    %1268 = vmatpush1.msra.mxu0 0.0
    %1269 = vmatprep.subr.mxu0 0.0
    %1270 = vmatpush1.msra.mxu0 0.0
    %1271 = vmatprep.subr.mxu0 0.0
    %1272 = vmatpush1.msra.mxu0 0.0
    %1273 = vmatprep.subr.mxu0 0.0
    %1274 = vmatpush1.msra.mxu0 0.0
    %1275 = vmatprep.subr.mxu0 0.0
    %1276 = vmatpush1.msra.mxu0 0.0
    %1277 = vmatprep.subr.mxu0 0.0
    %1278 = vmatpush1.msra.mxu0 0.0
    %1279 = vmatprep.subr.mxu0 0.0
    %1280 = vmatpush1.msra.mxu0 0.0
    %1281 = vmatprep.subr.mxu0 0.0
    %1282 = vmatpush1.msra.mxu0 0.0
    %1283 = vmatprep.mubr.f32.mxu0 0.0
    %1284 = vmatmul.mubr.f32.gmra.mrb[0].mxu0 %v858
    %v1285 = vpop.f32.mrb[0].mxu0
    %v1286 = vadd.f32 %v840, %v1285
    %v1287 = vpop.f32.mrb[0].mxu0
    %1288 = vmatprep.mubr.f32.mxu0 0.0
    %1289 = vmatmul.mubr.f32.gmra.mrb[0].mxu0 %v861
    %v1290 = vpop.f32.mrb[0].mxu0
    %v1291 = vadd.f32 %v845, %v1290
    %v1292 = vpop.f32.mrb[0].mxu0
    %1293 = vmatprep.mubr.f32.mxu0 0.0
    %1294 = vmatmul.mubr.f32.gmra.mrb[0].mxu0 %v864
    %v1295 = vpop.f32.mrb[0].mxu0
    %v1296 = vadd.f32 %v850, %v1295
    %v1297 = vpop.f32.mrb[0].mxu0
    %1298 = vmatprep.mubr.f32.mxu0 0.0
    %1299 = vmatmul.mubr.f32.gmra.mrb[0].mxu0 %v867
    %v1300 = vpop.f32.mrb[0].mxu0
    %v1301 = vadd.f32 %v855, %v1300
    %v1302 = vpop.f32.mrb[0].mxu0
    %1303 = vdwg.mxu0
    %v1304 = vmax.f32 %v1286, 0.0
    %v1305 = vmax.f32 %v1291, 0.0
    %v1306 = vmax.f32 %v1296, 0.0
    %v1307 = vmax.f32 %v1301, 0.0
    %v1308 = vmul.f32 %v1304, %v961
    %v1309 = vmul.f32 %v1305, %v966
    %v1310 = vmul.f32 %v1306, %v971
    %v1311 = vmul.f32 %v1307, %v976
    %v1312 = vsel %vm199, %v1308, 0.0
    %v1313 = vsel %vm199, %v1309, 0.0
    %v1314 = vadd.f32 %v1312, %v1313
    %v1315 = vsel %vm199, %v1310, 0.0
    %v1316 = vadd.f32 %v1314, %v1315
    %v1317 = vsel %vm199, %v1311, 0.0
    %v1318 = vadd.f32 %v1316, %v1317
    %v1319 = vrot.slane %v1318, 4
    %v1320 = vadd.f32 %v1318, %v1319
    %v1321 = vrot.slane %v1320, 2
    %v1322 = vadd.f32 %v1320, %v1321
    %v1323 = vrot.slane %v1322, 1
    %v1324 = vadd.f32 %v1322, %v1323
    %v1325 = vmax.f32 %v994, %v1104
    %v1326 = vmax.f32 %v1325, %v1214
    %v1327 = vmax.f32 %v1326, %v1324
    %v1328 = vsub.f32 %v994, %v1327
    %v1329 = vmul.f32 %v1328, 1.442695
    %v1330 = vpow.pop %v1329
    %v1331 = vsub.f32 %v1104, %v1327
    %v1332 = vmul.f32 %v1331, 1.442695
    %v1333 = vpow.pop %v1332
    %v1334 = vsub.f32 %v1214, %v1327
    %v1335 = vmul.f32 %v1334, 1.442695
    %v1336 = vpow.pop %v1335
    %v1337 = vsub.f32 %v1324, %v1327
    %v1338 = vmul.f32 %v1337, 1.442695
    %v1339 = vpow.pop %v1338
    %v1340 = vadd.f32 %v1330, %v1333
    %v1341 = vadd.f32 %v1340, %v1336
    %v1342 = vadd.f32 %v1341, %v1339
    %v1343 = vrcp.pop %v1342
    %v1344 = vmul.f32 %v1330, %v1343
    %v1345 = vmul.f32 %v1344, %v835
    %v1346 = vmul.f32 %v1344, %v836
    %v1347 = vmul.f32 %v1333, %v1343
    %v1348 = vmul.f32 %v1347, %v997
    %v1349 = vmul.f32 %v1347, %v998
    %v1350 = vadd.f32 %v1345, %v1348
    %v1351 = vadd.f32 %v1346, %v1349
    %v1352 = vmul.f32 %v1336, %v1343
    %v1353 = vmul.f32 %v1352, %v1107
    %v1354 = vmul.f32 %v1352, %v1108
    %v1355 = vadd.f32 %v1350, %v1353
    %v1356 = vadd.f32 %v1351, %v1354
    %v1357 = vmul.f32 %v1339, %v1343
    %v1358 = vmul.f32 %v1357, %v1217
    %v1359 = vmul.f32 %v1357, %v1218
    %v1360 = vadd.f32 %v1355, %v1358
    %v1361 = vadd.f32 %v1356, %v1359
    %v1362 = vld [vmem:[%s4] sm:$0xff]
    %v1363 = vld [vmem:[%s4 + $0x8] sm:$0xff]
    %v1364 = vld [vmem:[%s4 + $0x10] sm:$0xff]
    %v1365 = vld [vmem:[%s4 + $0x18] sm:$0xff]
    %v1366 = vld [vmem:[%s5] sm:$0xff]
    %v1367 = vld [vmem:[%s5 + $0x8] sm:$0xff]
    %v1368 = vld [vmem:[%s5 + $0x10] sm:$0xff]
    %v1369 = vld [vmem:[%s5 + $0x18] sm:$0xff]
    %v1370 = vld [vmem:[%s6] sm:$0xff]
    %v1371 = vld [vmem:[%s6 + $0x8] sm:$0xff]
    %v1372 = vld [vmem:[%s6 + $0x10] sm:$0xff]
    %v1373 = vld [vmem:[%s6 + $0x18] sm:$0xff]
    %1375 = vset.pattern.permute.xlu0 0
    %1376 = vperm.xlu0 %1375, %v1366
    %v1377 = vpop.permute.xlu0 %1376
    %1380 = vset.pattern.permute.xlu0 0
    %1381 = vperm.xlu0 %1380, %v1367
    %v1382 = vpop.permute.xlu0 %1381
    %1385 = vset.pattern.permute.xlu0 0
    %1386 = vperm.xlu0 %1385, %v1368
    %v1387 = vpop.permute.xlu0 %1386
    %1390 = vset.pattern.permute.xlu0 0
    %1391 = vperm.xlu0 %1390, %v1369
    %v1392 = vpop.permute.xlu0 %1391
    %v1395 = vsel %vm73, %v1362, 0
    %v1398 = vsel %vm73, %v1363, 0
    %v1401 = vsel %vm73, %v1364, 0
    %v1404 = vsel %vm73, %v1365, 0
    %1406 = vmatprep.subr.mxu0 0.0
    %1407 = vmatpush1.msra.mxu0 %v814
    %1408 = vmatprep.subr.mxu0 0.0
    %1409 = vmatpush1.msra.mxu0 %v815
    %1410 = vmatprep.subr.mxu0 0.0
    %1411 = vmatpush1.msra.mxu0 0.0
    %1412 = vmatprep.subr.mxu0 0.0
    %1413 = vmatpush1.msra.mxu0 0.0
    %1414 = vmatprep.subr.mxu0 0.0
    %1415 = vmatpush1.msra.mxu0 0.0
    %1416 = vmatprep.subr.mxu0 0.0
    %1417 = vmatpush1.msra.mxu0 0.0
    %1418 = vmatprep.subr.mxu0 0.0
    %1419 = vmatpush1.msra.mxu0 0.0
    %1420 = vmatprep.subr.mxu0 0.0
    %1421 = vmatpush1.msra.mxu0 0.0
    %1422 = vmatprep.subr.mxu0 0.0
    %1423 = vmatpush1.msra.mxu0 0.0
    %1424 = vmatprep.subr.mxu0 0.0
    %1425 = vmatpush1.msra.mxu0 0.0
    %1426 = vmatprep.subr.mxu0 0.0
    %1427 = vmatpush1.msra.mxu0 0.0
    %1428 = vmatprep.subr.mxu0 0.0
    %1429 = vmatpush1.msra.mxu0 0.0
    %1430 = vmatprep.subr.mxu0 0.0
    %1431 = vmatpush1.msra.mxu0 0.0
    %1432 = vmatprep.subr.mxu0 0.0
    %1433 = vmatpush1.msra.mxu0 0.0
    %1434 = vmatprep.subr.mxu0 0.0
    %1435 = vmatpush1.msra.mxu0 0.0
    %1436 = vmatprep.subr.mxu0 0.0
    %1437 = vmatpush1.msra.mxu0 0.0
    %1438 = vmatprep.subr.mxu0 0.0
    %1439 = vmatpush1.msra.mxu0 0.0
    %1440 = vmatprep.subr.mxu0 0.0
    %1441 = vmatpush1.msra.mxu0 0.0
    %1442 = vmatprep.subr.mxu0 0.0
    %1443 = vmatpush1.msra.mxu0 0.0
    %1444 = vmatprep.subr.mxu0 0.0
    %1445 = vmatpush1.msra.mxu0 0.0
    %1446 = vmatprep.subr.mxu0 0.0
    %1447 = vmatpush1.msra.mxu0 0.0
    %1448 = vmatprep.subr.mxu0 0.0
    %1449 = vmatpush1.msra.mxu0 0.0
    %1450 = vmatprep.subr.mxu0 0.0
    %1451 = vmatpush1.msra.mxu0 0.0
    %1452 = vmatprep.subr.mxu0 0.0
    %1453 = vmatpush1.msra.mxu0 0.0
    %1454 = vmatprep.subr.mxu0 0.0
    %1455 = vmatpush1.msra.mxu0 0.0
    %1456 = vmatprep.subr.mxu0 0.0
    %1457 = vmatpush1.msra.mxu0 0.0
    %1458 = vmatprep.subr.mxu0 0.0
    %1459 = vmatpush1.msra.mxu0 0.0
    %1460 = vmatprep.subr.mxu0 0.0
    %1461 = vmatpush1.msra.mxu0 0.0
    %1462 = vmatprep.subr.mxu0 0.0
    %1463 = vmatpush1.msra.mxu0 0.0
    %1464 = vmatprep.subr.mxu0 0.0
    %1465 = vmatpush1.msra.mxu0 0.0
    %1466 = vmatprep.subr.mxu0 0.0
    %1467 = vmatpush1.msra.mxu0 0.0
    %1468 = vmatprep.subr.mxu0 0.0
    %1469 = vmatpush1.msra.mxu0 0.0
    %1470 = vmatprep.mubr.f32.mxu0 0.0
    %1471 = vmatmul.mubr.f32.gmra.mrb[0].mxu0 %v1395
    %v1472 = vpop.f32.mrb[0].mxu0
    %v1473 = vadd.f32 %v1377, %v1472
    %v1474 = vpop.f32.mrb[0].mxu0
    %1475 = vmatprep.mubr.f32.mxu0 0.0
    %1476 = vmatmul.mubr.f32.gmra.mrb[0].mxu0 %v1398
    %v1477 = vpop.f32.mrb[0].mxu0
    %v1478 = vadd.f32 %v1382, %v1477
    %v1479 = vpop.f32.mrb[0].mxu0
    %1480 = vmatprep.mubr.f32.mxu0 0.0
    %1481 = vmatmul.mubr.f32.gmra.mrb[0].mxu0 %v1401
    %v1482 = vpop.f32.mrb[0].mxu0
    %v1483 = vadd.f32 %v1387, %v1482
    %v1484 = vpop.f32.mrb[0].mxu0
    %1485 = vmatprep.mubr.f32.mxu0 0.0
    %1486 = vmatmul.mubr.f32.gmra.mrb[0].mxu0 %v1404
    %v1487 = vpop.f32.mrb[0].mxu0
    %v1488 = vadd.f32 %v1392, %v1487
    %v1489 = vpop.f32.mrb[0].mxu0
    %1490 = vdwg.mxu0
    %v1491 = vmax.f32 %v1473, 0.0
    %v1492 = vmax.f32 %v1478, 0.0
    %v1493 = vmax.f32 %v1483, 0.0
    %v1494 = vmax.f32 %v1488, 0.0
    %1496 = vset.pattern.permute.xlu0 0
    %1497 = vperm.xlu0 %1496, %v1370
    %v1498 = vpop.permute.xlu0 %1497
    %1501 = vset.pattern.permute.xlu0 0
    %1502 = vperm.xlu0 %1501, %v1371
    %v1503 = vpop.permute.xlu0 %1502
    %1506 = vset.pattern.permute.xlu0 0
    %1507 = vperm.xlu0 %1506, %v1372
    %v1508 = vpop.permute.xlu0 %1507
    %1511 = vset.pattern.permute.xlu0 0
    %1512 = vperm.xlu0 %1511, %v1373
    %v1513 = vpop.permute.xlu0 %1512
    %v1515 = vmul.f32 %v1491, %v1498
    %v1516 = vmul.f32 %v1492, %v1503
    %v1517 = vmul.f32 %v1493, %v1508
    %v1518 = vmul.f32 %v1494, %v1513
    %v1519 = vsel %vm199, %v1515, 0.0
    %v1520 = vsel %vm199, %v1516, 0.0
    %v1521 = vadd.f32 %v1519, %v1520
    %v1522 = vsel %vm199, %v1517, 0.0
    %v1523 = vadd.f32 %v1521, %v1522
    %v1524 = vsel %vm199, %v1518, 0.0
    %v1525 = vadd.f32 %v1523, %v1524
    %v1526 = vrot.slane %v1525, 4
    %v1527 = vadd.f32 %v1525, %v1526
    %v1528 = vrot.slane %v1527, 2
    %v1529 = vadd.f32 %v1527, %v1528
    %v1530 = vrot.slane %v1529, 1
    %v1531 = vadd.f32 %v1529, %v1530
    %1532 = vmatprep.subr.mxu0 0.0
    %1533 = vmatpush1.msra.mxu0 %v1360
    %1534 = vmatprep.subr.mxu0 0.0
    %1535 = vmatpush1.msra.mxu0 %v1361
    %1536 = vmatprep.subr.mxu0 0.0
    %1537 = vmatpush1.msra.mxu0 0.0
    %1538 = vmatprep.subr.mxu0 0.0
    %1539 = vmatpush1.msra.mxu0 0.0
    %1540 = vmatprep.subr.mxu0 0.0
    %1541 = vmatpush1.msra.mxu0 0.0
    %1542 = vmatprep.subr.mxu0 0.0
    %1543 = vmatpush1.msra.mxu0 0.0
    %1544 = vmatprep.subr.mxu0 0.0
    %1545 = vmatpush1.msra.mxu0 0.0
    %1546 = vmatprep.subr.mxu0 0.0
    %1547 = vmatpush1.msra.mxu0 0.0
    %1548 = vmatprep.subr.mxu0 0.0
    %1549 = vmatpush1.msra.mxu0 0.0
    %1550 = vmatprep.subr.mxu0 0.0
    %1551 = vmatpush1.msra.mxu0 0.0
    %1552 = vmatprep.subr.mxu0 0.0
    %1553 = vmatpush1.msra.mxu0 0.0
    %1554 = vmatprep.subr.mxu0 0.0
    %1555 = vmatpush1.msra.mxu0 0.0
    %1556 = vmatprep.subr.mxu0 0.0
    %1557 = vmatpush1.msra.mxu0 0.0
    %1558 = vmatprep.subr.mxu0 0.0
    %1559 = vmatpush1.msra.mxu0 0.0
    %1560 = vmatprep.subr.mxu0 0.0
    %1561 = vmatpush1.msra.mxu0 0.0
    %1562 = vmatprep.subr.mxu0 0.0
    %1563 = vmatpush1.msra.mxu0 0.0
    %1564 = vmatprep.subr.mxu0 0.0
    %1565 = vmatpush1.msra.mxu0 0.0
    %1566 = vmatprep.subr.mxu0 0.0
    %1567 = vmatpush1.msra.mxu0 0.0
    %1568 = vmatprep.subr.mxu0 0.0
    %1569 = vmatpush1.msra.mxu0 0.0
    %1570 = vmatprep.subr.mxu0 0.0
    %1571 = vmatpush1.msra.mxu0 0.0
    %1572 = vmatprep.subr.mxu0 0.0
    %1573 = vmatpush1.msra.mxu0 0.0
    %1574 = vmatprep.subr.mxu0 0.0
    %1575 = vmatpush1.msra.mxu0 0.0
    %1576 = vmatprep.subr.mxu0 0.0
    %1577 = vmatpush1.msra.mxu0 0.0
    %1578 = vmatprep.subr.mxu0 0.0
    %1579 = vmatpush1.msra.mxu0 0.0
    %1580 = vmatprep.subr.mxu0 0.0
    %1581 = vmatpush1.msra.mxu0 0.0
    %1582 = vmatprep.subr.mxu0 0.0
    %1583 = vmatpush1.msra.mxu0 0.0
    %1584 = vmatprep.subr.mxu0 0.0
    %1585 = vmatpush1.msra.mxu0 0.0
    %1586 = vmatprep.subr.mxu0 0.0
    %1587 = vmatpush1.msra.mxu0 0.0
    %1588 = vmatprep.subr.mxu0 0.0
    %1589 = vmatpush1.msra.mxu0 0.0
    %1590 = vmatprep.subr.mxu0 0.0
    %1591 = vmatpush1.msra.mxu0 0.0
    %1592 = vmatprep.subr.mxu0 0.0
    %1593 = vmatpush1.msra.mxu0 0.0
    %1594 = vmatprep.subr.mxu0 0.0
    %1595 = vmatpush1.msra.mxu0 0.0
    %1596 = vmatprep.mubr.f32.mxu0 0.0
    %1597 = vmatmul.mubr.f32.gmra.mrb[0].mxu0 %v1395
    %v1598 = vpop.f32.mrb[0].mxu0
    %v1599 = vadd.f32 %v1377, %v1598
    %v1600 = vpop.f32.mrb[0].mxu0
    %1601 = vmatprep.mubr.f32.mxu0 0.0
    %1602 = vmatmul.mubr.f32.gmra.mrb[0].mxu0 %v1398
    %v1603 = vpop.f32.mrb[0].mxu0
    %v1604 = vadd.f32 %v1382, %v1603
    %v1605 = vpop.f32.mrb[0].mxu0
    %1606 = vmatprep.mubr.f32.mxu0 0.0
    %1607 = vmatmul.mubr.f32.gmra.mrb[0].mxu0 %v1401
    %v1608 = vpop.f32.mrb[0].mxu0
    %v1609 = vadd.f32 %v1387, %v1608
    %v1610 = vpop.f32.mrb[0].mxu0
    %1611 = vmatprep.mubr.f32.mxu0 0.0
    %1612 = vmatmul.mubr.f32.gmra.mrb[0].mxu0 %v1404
    %v1613 = vpop.f32.mrb[0].mxu0
    %v1614 = vadd.f32 %v1392, %v1613
    %v1615 = vpop.f32.mrb[0].mxu0
    %1616 = vdwg.mxu0
    %v1617 = vmax.f32 %v1599, 0.0
    %v1618 = vmax.f32 %v1604, 0.0
    %v1619 = vmax.f32 %v1609, 0.0
    %v1620 = vmax.f32 %v1614, 0.0
    %v1621 = vmul.f32 %v1617, %v1498
    %v1622 = vmul.f32 %v1618, %v1503
    %v1623 = vmul.f32 %v1619, %v1508
    %v1624 = vmul.f32 %v1620, %v1513
    %v1625 = vsel %vm199, %v1621, 0.0
    %v1626 = vsel %vm199, %v1622, 0.0
    %v1627 = vadd.f32 %v1625, %v1626
    %v1628 = vsel %vm199, %v1623, 0.0
    %v1629 = vadd.f32 %v1627, %v1628
    %v1630 = vsel %vm199, %v1624, 0.0
    %v1631 = vadd.f32 %v1629, %v1630
    %v1632 = vrot.slane %v1631, 4
    %v1633 = vadd.f32 %v1631, %v1632
    %v1634 = vrot.slane %v1633, 2
    %v1635 = vadd.f32 %v1633, %v1634
    %v1636 = vrot.slane %v1635, 1
    %v1637 = vadd.f32 %v1635, %v1636
    %v1638 = vmax.f32 %v1531, %v1637
    %v1639 = vsub.f32 %v1531, %v1638
    %v1640 = vmul.f32 %v1639, 1.442695
    %v1641 = vpow.pop %v1640
    %v1642 = vsub.f32 %v1637, %v1638
    %v1643 = vmul.f32 %v1642, 1.442695
    %v1644 = vpow.pop %v1643
    %v1645 = vadd.f32 %v1641, %v1644
    %v1646 = vrcp.pop %v1645
    %v1647 = vmul.f32 %v1641, %v1646
    %v1648 = vmul.f32 %v1647, %v814
    %v1649 = vmul.f32 %v1647, %v815
    %v1650 = vmul.f32 %v1644, %v1646
    %v1651 = vmul.f32 %v1650, %v1360
    %v1652 = vmul.f32 %v1650, %v1361
    %v1653 = vadd.f32 %v1648, %v1651
    %v1654 = vadd.f32 %v1649, %v1652
    %v1655 = vld [vmem:[%s7] sm:$0xff]
    %v1656 = vld [vmem:[%s7 + $0x8] sm:$0xff]
    %1658 = vset.pattern.permute.xlu0 0
    %1659 = vperm.xlu0 %1658, %v1655
    %v1660 = vpop.permute.xlu0 %1659
    %1663 = vset.pattern.permute.xlu0 0
    %1664 = vperm.xlu0 %1663, %v1656
    %v1665 = vpop.permute.xlu0 %1664
    %v1667 = vmul.f32 %v1653, %v1660
    %v1668 = vmul.f32 %v1654, %v1665
    %v1669 = vsel %vm199, %v1667, 0.0
    %v1670 = vsel %vm199, %v1668, 0.0
    %v1671 = vadd.f32 %v1669, %v1670
    %v1672 = vrot.slane %v1671, 4
    %v1673 = vadd.f32 %v1671, %v1672
    %v1674 = vrot.slane %v1673, 2
    %v1675 = vadd.f32 %v1673, %v1674
    %v1676 = vrot.slane %v1675, 1
    %v1677 = vadd.f32 %v1675, %v1676
    %s1678 = sld [smem:[#allocation2]]
    %v1679 = vstv %s1678
    %v1680 = vadd.f32 %v1677, %v1679
    %vm1681 = vcmask 8192
    %1682 = vst.msk [vmem:[#allocation3] sm:$0x1] %vm1681, %v1680
    // Predicated region
    $region38: #{tpu_custom_call.1} parent=1 // pred_check
      _
    $region39: #{tpu_custom_call.1} parent=1 // pred_check_branch
      %1684 = sbr.rel (0) target = $region41
    $region40: #{tpu_custom_call.1} parent=1 // pred_region
      %s1686 = ssub.s32 16, 16
      %1687 = vsyncadd [#allocation4], %s1686
      %s1689 = sshll.u32 [#allocation3], 4
      %s1690 = int_to_ptr.vmem [resolvable:$true] %s1689
      %1692 = dma.vmem_to_hbm [thread:$0]  %s1690, 16, %s9, [#allocation4]
    $region41: #{tpu_custom_call.1} parent=1 // pred_fallthru
      _
    // Predicated region
    $region42: #{tpu_custom_call.1} parent=1 // pred_check
      _
    $region43: #{tpu_custom_call.1} parent=1 // pred_check_branch
      %1694 = sbr.rel (0) target = $region45
    $region44: #{tpu_custom_call.1} parent=1 // pred_region
      %1695 = dma.done [#allocation4], 16
    $region45: #{tpu_custom_call.1} parent=1 // pred_fallthru
      _
    %1696 = vsyncpa [#allocation4], 1

</llo_original>
